<compile_context>
chip_gen: v7x
topology: tpu7x:2x2x1
jax: 0.10.0
libtpu: 0.0.40
codegen_flags: <defaults>
</compile_context>

<pallas_src>
import functools

import jax
import jax.numpy as jnp
from jax.experimental import pallas as pl
from jax.experimental.pallas import tpu as pltpu

_H1, _H2, _H3 = 512, 256, 128   # hidden*4, hidden*2, hidden


def _round_up(x, m):
    return ((x + m - 1) // m) * m


# ------------------------------ Pallas kernel ------------------------------

def _associationp_kernel(xx_ref, w1_ref, b1_ref, w2_ref, b2_ref,
                         w3_ref, b3_ref, p_ref, *, compute_dtype):
    """Fused: stacked 3-layer MLP + cosine similarity + p=(cos+1)/2.

    xx_ref : [2*be, d]   rows 0..be-1 are x1, rows be..2be-1 are x2
    p_ref  : [1, be]     lane-dense probability row for this block
    """
    cd = compute_dtype
    be = xx_ref.shape[0] // 2

    # ---- 3-layer MLP on the row-stacked block (weights already in cd).
    h = jnp.dot(xx_ref[...], w1_ref[...],
                preferred_element_type=jnp.float32) + b1_ref[...]
    h = jnp.maximum(h, 0.0)
    # (BN1 folded into w2/b2 by the wrapper.)
    h = jnp.dot(h.astype(cd), w2_ref[...],
                preferred_element_type=jnp.float32) + b2_ref[...]
    h = jnp.maximum(h, 0.0)
    # (BN2 + eval-mode Dropout identity folded into w3/b3 by the wrapper.)
    h = jnp.dot(h.astype(cd), w3_ref[...],
                preferred_element_type=jnp.float32) + b3_ref[...]   # [2be,128] f32

    # ---- cosine similarity, computed in the transposed (lane-dense) frame so
    # the result lands directly as a [1, be] row (XLU transpose + sublane sums).
    ht = h.T                      # [128, 2be]
    h1t = ht[:, :be]
    h2t = ht[:, be:]

    eps = 1e-8
    w12 = jnp.sum(h1t * h2t, axis=0, keepdims=True)   # [1, be]
    n1 = jnp.sum(h1t * h1t, axis=0, keepdims=True)
    n2 = jnp.sum(h2t * h2t, axis=0, keepdims=True)
    # torch: x.y / max(||x||*||y||, eps)  ==  x.y * min(rsqrt(n1*n2), 1/eps)
    inv = jnp.minimum(jax.lax.rsqrt(n1 * n2), 1.0 / eps)
    p_ref[...] = (w12 * inv + 1.0) * 0.5


# ------------------------------- wrapper -----------------------------------

def associationp_forward(params, x, *, block_e=512, bn_eps=1e-5,
                         compute_dtype=jnp.bfloat16):
    """p = associationP(x);  x: [E, 2*d_in]  ->  p: [E].

    compute_dtype=bfloat16 runs the MXU at native rate (f32 accumulation);
    pass jnp.float32 for exact-eval semantics.
    """
    E, two_d = x.shape
    d_in = two_d // 2
    cd = compute_dtype

    # ---- fold eval-mode BatchNorm1d (Linear->ReLU->BN) into the next Linear.
    s1 = params["bn1_gamma"] * jax.lax.rsqrt(params["bn1_var"] + bn_eps)
    t1 = params["bn1_beta"] - params["bn1_mean"] * s1
    s2 = params["bn2_gamma"] * jax.lax.rsqrt(params["bn2_var"] + bn_eps)
    t2 = params["bn2_beta"] - params["bn2_mean"] * s2

    w1 = params["w1"].astype(cd)
    b1 = params["b1"]
    w2 = (s1[:, None] * params["w2"]).astype(cd)
    b2 = params["b2"] + (t1 @ params["w2"])[None, :]
    w3 = (s2[:, None] * params["w3"]).astype(cd)
    b3 = params["b3"] + (t2 @ params["w3"])[None, :]

    # ---- block sizing: lane-aligned blocks; keep >=2 blocks when possible so
    # the "parallel" grid axis can shard across v7x's two TensorCores.
    block_e = max(128, min(_round_up(block_e, 128), _round_up(E, 128)))
    e_pad = _round_up(E, block_e)
    if e_pad // block_e < 2 and e_pad > 128:
        block_e = _round_up(max(128, e_pad // 2), 128)
        e_pad = _round_up(E, block_e)
    nb = e_pad // block_e

    # ---- single pre-stacking pass: per block, rows are [x1_block; x2_block]
    # so the kernel runs ONE matmul chain per layer on a [2*block_e, d] tile.
    xc = x.astype(cd)
    x1 = xc[:, :d_in]
    x2 = xc[:, d_in:]
    if e_pad != E:
        pad = ((0, e_pad - E), (0, 0))
        x1 = jnp.pad(x1, pad)
        x2 = jnp.pad(x2, pad)
    xx = jnp.stack([x1.reshape(nb, block_e, d_in),
                    x2.reshape(nb, block_e, d_in)], axis=1)
    xx = xx.reshape(nb * 2 * block_e, d_in)

    # ---- cost estimate + VMEM budget (double-buffered in/out + weights +
    # f32 intermediates), clamped to [32 MiB, 64 MiB] so it is valid on
    # v5e (16 MiB scoped default, 128 MiB phys) through v7x (64 MiB phys).
    cd_size = jnp.dtype(cd).itemsize
    w_elems = d_in * _H1 + _H1 * _H2 + _H2 * _H3
    cost = pl.CostEstimate(
        flops=2 * 2 * e_pad * w_elems + 8 * e_pad * _H3,
        transcendentals=e_pad,
        bytes_accessed=(2 * e_pad * d_in * cd_size + w_elems * cd_size
                        + (_H1 + _H2 + _H3) * 4 + e_pad * 4))

    in_blk = 2 * block_e * d_in * cd_size
    w_blk = w_elems * cd_size + (_H1 + _H2 + _H3) * 4
    out_blk = block_e * 4
    interm = 2 * block_e * (_H1 + _H2 + 3 * _H3) * 4
    vmem_limit = int(min(64 * 2**20,
                         max(32 * 2**20,
                             2 * (2 * (in_blk + w_blk + out_blk) + interm))))

    p_row = pl.pallas_call(
        functools.partial(_associationp_kernel, compute_dtype=cd),
        out_shape=jax.ShapeDtypeStruct((1, e_pad), jnp.float32),
        grid_spec=pltpu.PrefetchScalarGridSpec(
            num_scalar_prefetch=0,
            grid=(nb,),
            in_specs=[
                pl.BlockSpec((2 * block_e, d_in), lambda i: (i, 0)),  # stacked x
                pl.BlockSpec(w1.shape, lambda i: (0, 0)),
                pl.BlockSpec(b1.shape, lambda i: (0, 0)),
                pl.BlockSpec(w2.shape, lambda i: (0, 0)),
                pl.BlockSpec(b2.shape, lambda i: (0, 0)),
                pl.BlockSpec(w3.shape, lambda i: (0, 0)),
                pl.BlockSpec(b3.shape, lambda i: (0, 0)),
            ],
            out_specs=pl.BlockSpec((1, block_e), lambda i: (0, i)),
        ),
        compiler_params=pltpu.CompilerParams(
            dimension_semantics=("parallel",),
            vmem_limit_bytes=vmem_limit),
        cost_estimate=cost,
    )(xx, w1, b1, w2, b2, w3, b3)

    return p_row[0, :E]                                            # [E]


# ----------------------------- params / reference --------------------------

def init_params(key, *, input_dim):
    """kaiming_normal Linear weights (stored [Fin, Fout]), zero biases,
    non-trivial BatchNorm1d running stats / affine (to exercise BN folding)."""
    hidden = 128
    ks = jax.random.split(key, 11)

    def kaiming(k, fan_in, shape):
        return jnp.sqrt(2.0 / fan_in) * jax.random.normal(k, shape, jnp.float32)

    p = {
        "w1": kaiming(ks[0], input_dim, (input_dim, hidden * 4)),
        "b1": jnp.zeros((1, hidden * 4), jnp.float32),
        "w2": kaiming(ks[1], hidden * 4, (hidden * 4, hidden * 2)),
        "b2": jnp.zeros((1, hidden * 2), jnp.float32),
        "w3": kaiming(ks[2], hidden * 2, (hidden * 2, hidden)),
        "b3": jnp.zeros((1, hidden), jnp.float32),
        "bn1_gamma": 1.0 + 0.1 * jax.random.normal(ks[3], (hidden * 4,), jnp.float32),
        "bn1_beta": 0.1 * jax.random.normal(ks[4], (hidden * 4,), jnp.float32),
        "bn1_mean": 0.1 * jax.random.normal(ks[5], (hidden * 4,), jnp.float32),
        "bn1_var": jax.random.uniform(ks[6], (hidden * 4,), jnp.float32, 0.5, 1.5),
        "bn2_gamma": 1.0 + 0.1 * jax.random.normal(ks[7], (hidden * 2,), jnp.float32),
        "bn2_beta": 0.1 * jax.random.normal(ks[8], (hidden * 2,), jnp.float32),
        "bn2_mean": 0.1 * jax.random.normal(ks[9], (hidden * 2,), jnp.float32),
        "bn2_var": jax.random.uniform(ks[10], (hidden * 2,), jnp.float32, 0.5, 1.5),
    }
    return p


def _reference_forward(params, x, bn_eps=1e-5):
    """Plain-JAX eval-mode reference (sanity check only)."""
    d = x.shape[1] // 2
    hi = jax.lax.Precision.HIGHEST

    def bn(h, g, b, m, v):
        return (h - m) * (g * jax.lax.rsqrt(v + bn_eps)) + b

    def mlp(z):
        h = jnp.maximum(jnp.dot(z, params["w1"], precision=hi) + params["b1"], 0.0)
        h = bn(h, params["bn1_gamma"], params["bn1_beta"],
               params["bn1_mean"], params["bn1_var"])
        h = jnp.maximum(jnp.dot(h, params["w2"], precision=hi) + params["b2"], 0.0)
        h = bn(h, params["bn2_gamma"], params["bn2_beta"],
               params["bn2_mean"], params["bn2_var"])
        return jnp.dot(h, params["w3"], precision=hi) + params["b3"]

    h1 = mlp(x[:, :d])
    h2 = mlp(x[:, d:])
    eps = 1e-8
    n12 = jnp.sqrt(jnp.sum(h1 * h1, axis=1) * jnp.sum(h2 * h2, axis=1))
    cos = jnp.sum(h1 * h2, axis=1) / jnp.maximum(n12, eps)
    return (cos + 1.0) * 0.5


# ---------------------------------- main ------------------------------------

if __name__ == "__main__":
    E = 64                 # number of edges (rows of x)
    INPUT_DIM = 16         # associationP input_dim; x has 2*INPUT_DIM features

    key = jax.random.PRNGKey(0)
    kx, kp, kx2 = jax.random.split(key, 3)
    x = jax.random.normal(kx, (E, 2 * INPUT_DIM), jnp.float32)
    params = init_params(kp, input_dim=INPUT_DIM)

    fwd_bf16 = jax.jit(functools.partial(associationp_forward, block_e=512,
                                         compute_dtype=jnp.bfloat16))
    fwd_f32 = jax.jit(functools.partial(associationp_forward, block_e=512,
                                        compute_dtype=jnp.float32))

    # default (bf16 matmul inputs, f32 accumulation) path
    p = fwd_bf16(params, x)
    jax.block_until_ready(p)
    p_ref = _reference_forward(params, x)
    assert p.shape == (E,)
    assert bool(jnp.all(jnp.isfinite(p)))
    assert bool(jnp.all((p >= -1e-4) & (p <= 1.0 + 1e-4)))
    assert float(jnp.max(jnp.abs(p - p_ref))) < 3e-2, "bf16 mismatch vs reference"

    # exact-ish f32 path
    p32 = fwd_f32(params, x)
    jax.block_until_ready(p32)
    assert float(jnp.max(jnp.abs(p32 - p_ref))) < 2e-3, "f32 mismatch vs reference"

    # ragged edge count -> padding + multi-block "parallel" grid
    E2 = 300
    x2 = jax.random.normal(kx2, (E2, 2 * INPUT_DIM), jnp.float32)
    p2 = fwd_bf16(params, x2)
    jax.block_until_ready(p2)
    p2_ref = _reference_forward(params, x2)
    assert p2.shape == (E2,)
    assert bool(jnp.all(jnp.isfinite(p2)))
    assert float(jnp.max(jnp.abs(p2 - p2_ref))) < 3e-2, "ragged mismatch vs reference"

    print("KERNEL_OK")
</pallas_src>

<mosaic_0001>
module attributes {stable_mosaic.version = 11 : i64} {
  func.func @_associationp_kernel(%arg0: i32, %arg1: memref<256x16xbf16, #tpu.memory_space<vmem>>, %arg2: memref<16x512xbf16, #tpu.memory_space<vmem>>, %arg3: memref<1x512xf32, #tpu.memory_space<vmem>>, %arg4: memref<512x256xbf16, #tpu.memory_space<vmem>>, %arg5: memref<1x256xf32, #tpu.memory_space<vmem>>, %arg6: memref<256x128xbf16, #tpu.memory_space<vmem>>, %arg7: memref<1x128xf32, #tpu.memory_space<vmem>>, %arg8: memref<1x128xf32, #tpu.memory_space<vmem>>) attributes {dimension_semantics = [#tpu.dimension_semantics<parallel>], iteration_bounds = array<i64: 1>, scalar_prefetch = 0 : i64, scratch_operands = 0 : i64, tpu.core_type = #tpu.core_type<tc>, window_params = [{transform_indices = @transform_0, window_bounds = array<i64: 256, 16>}, {pipeline_mode = #tpu.pipeline_mode<synchronous>, transform_indices = @transform_1, window_bounds = array<i64: 16, 512>}, {pipeline_mode = #tpu.pipeline_mode<synchronous>, transform_indices = @transform_2, window_bounds = array<i64: 1, 512>}, {pipeline_mode = #tpu.pipeline_mode<synchronous>, transform_indices = @transform_3, window_bounds = array<i64: 512, 256>}, {pipeline_mode = #tpu.pipeline_mode<synchronous>, transform_indices = @transform_4, window_bounds = array<i64: 1, 256>}, {pipeline_mode = #tpu.pipeline_mode<synchronous>, transform_indices = @transform_5, window_bounds = array<i64: 256, 128>}, {pipeline_mode = #tpu.pipeline_mode<synchronous>, transform_indices = @transform_6, window_bounds = array<i64: 1, 128>}, {transform_indices = @transform_7, window_bounds = array<i64: 1, 128>}]} {
    %c0 = arith.constant 0 : index
    %c0_0 = arith.constant 0 : index
    %0 = vector.load %arg1[%c0, %c0_0] : memref<256x16xbf16, #tpu.memory_space<vmem>>, vector<256x16xbf16>
    %c0_1 = arith.constant 0 : index
    %c0_2 = arith.constant 0 : index
    %1 = vector.load %arg2[%c0_1, %c0_2] : memref<16x512xbf16, #tpu.memory_space<vmem>>, vector<16x512xbf16>
    %cst = arith.constant dense<0.000000e+00> : vector<256x512xf32>
    %2 = tpu.matmul %0, %1, %cst {dimension_numbers = #tpu.dot_dimension_numbers<[1], [0], [0], [1], [0, 0, 1, 1], [], []>} : vector<256x16xbf16>, vector<16x512xbf16>, vector<256x512xf32> -> vector<256x512xf32>
    %c0_3 = arith.constant 0 : index
    %c0_4 = arith.constant 0 : index
    %3 = vector.load %arg3[%c0_3, %c0_4] : memref<1x512xf32, #tpu.memory_space<vmem>>, vector<1x512xf32>
    %4 = vector.broadcast %3 : vector<1x512xf32> to vector<256x512xf32>
    %5 = arith.addf %2, %4 : vector<256x512xf32>
    %cst_5 = arith.constant 0.000000e+00 : f32
    %6 = vector.broadcast %cst_5 : f32 to vector<256x512xf32>
    %7 = arith.maximumf %5, %6 : vector<256x512xf32>
    %8 = arith.truncf %7 : vector<256x512xf32> to vector<256x512xbf16>
    %c0_6 = arith.constant 0 : index
    %c0_7 = arith.constant 0 : index
    %9 = vector.load %arg4[%c0_6, %c0_7] : memref<512x256xbf16, #tpu.memory_space<vmem>>, vector<512x256xbf16>
    %cst_8 = arith.constant dense<0.000000e+00> : vector<256x256xf32>
    %10 = tpu.matmul %8, %9, %cst_8 {dimension_numbers = #tpu.dot_dimension_numbers<[1], [0], [0], [1], [0, 0, 1, 1], [], []>} : vector<256x512xbf16>, vector<512x256xbf16>, vector<256x256xf32> -> vector<256x256xf32>
    %c0_9 = arith.constant 0 : index
    %c0_10 = arith.constant 0 : index
    %11 = vector.load %arg5[%c0_9, %c0_10] : memref<1x256xf32, #tpu.memory_space<vmem>>, vector<1x256xf32>
    %12 = vector.broadcast %11 : vector<1x256xf32> to vector<256x256xf32>
    %13 = arith.addf %10, %12 : vector<256x256xf32>
    %cst_11 = arith.constant 0.000000e+00 : f32
    %14 = vector.broadcast %cst_11 : f32 to vector<256x256xf32>
    %15 = arith.maximumf %13, %14 : vector<256x256xf32>
    %16 = arith.truncf %15 : vector<256x256xf32> to vector<256x256xbf16>
    %c0_12 = arith.constant 0 : index
    %c0_13 = arith.constant 0 : index
    %17 = vector.load %arg6[%c0_12, %c0_13] : memref<256x128xbf16, #tpu.memory_space<vmem>>, vector<256x128xbf16>
    %cst_14 = arith.constant dense<0.000000e+00> : vector<256x128xf32>
    %18 = tpu.matmul %16, %17, %cst_14 {dimension_numbers = #tpu.dot_dimension_numbers<[1], [0], [0], [1], [0, 0, 1, 1], [], []>} : vector<256x256xbf16>, vector<256x128xbf16>, vector<256x128xf32> -> vector<256x128xf32>
    %c0_15 = arith.constant 0 : index
    %c0_16 = arith.constant 0 : index
    %19 = vector.load %arg7[%c0_15, %c0_16] : memref<1x128xf32, #tpu.memory_space<vmem>>, vector<1x128xf32>
    %20 = vector.broadcast %19 : vector<1x128xf32> to vector<256x128xf32>
    %21 = arith.addf %18, %20 : vector<256x128xf32>
    %22 = tpu.transpose %21, [1, 0] : vector<256x128xf32> -> vector<128x256xf32>
    %23 = vector.extract_strided_slice %22 {offsets = [0, 0], sizes = [128, 128], strides = [1, 1]} : vector<128x256xf32> to vector<128x128xf32>
    %24 = vector.extract_strided_slice %22 {offsets = [0, 128], sizes = [128, 128], strides = [1, 1]} : vector<128x256xf32> to vector<128x128xf32>
    %25 = arith.mulf %23, %24 : vector<128x128xf32>
    %cst_17 = arith.constant dense<0.000000e+00> : vector<128xf32>
    %26 = vector.multi_reduction <add>, %25, %cst_17 [0] : vector<128x128xf32> to vector<128xf32>
    %27 = vector.shape_cast %26 : vector<128xf32> to vector<1x128xf32>
    %28 = arith.mulf %23, %23 : vector<128x128xf32>
    %cst_18 = arith.constant dense<0.000000e+00> : vector<128xf32>
    %29 = vector.multi_reduction <add>, %28, %cst_18 [0] : vector<128x128xf32> to vector<128xf32>
    %30 = vector.shape_cast %29 : vector<128xf32> to vector<1x128xf32>
    %31 = arith.mulf %24, %24 : vector<128x128xf32>
    %cst_19 = arith.constant dense<0.000000e+00> : vector<128xf32>
    %32 = vector.multi_reduction <add>, %31, %cst_19 [0] : vector<128x128xf32> to vector<128xf32>
    %33 = vector.shape_cast %32 : vector<128xf32> to vector<1x128xf32>
    %34 = arith.mulf %30, %33 : vector<1x128xf32>
    %35 = math.rsqrt %34 : vector<1x128xf32>
    %cst_20 = arith.constant 1.000000e+08 : f32
    %36 = vector.broadcast %cst_20 : f32 to vector<1x128xf32>
    %37 = arith.minimumf %35, %36 : vector<1x128xf32>
    %38 = arith.mulf %27, %37 : vector<1x128xf32>
    %cst_21 = arith.constant 1.000000e+00 : f32
    %39 = vector.broadcast %cst_21 : f32 to vector<1x128xf32>
    %40 = arith.addf %38, %39 : vector<1x128xf32>
    %cst_22 = arith.constant 5.000000e-01 : f32
    %41 = vector.broadcast %cst_22 : f32 to vector<1x128xf32>
    %42 = arith.mulf %40, %41 : vector<1x128xf32>
    %c0_23 = arith.constant 0 : index
    %c0_24 = arith.constant 0 : index
    %43 = vector.load %arg8[%c0_23, %c0_24] : memref<1x128xf32, #tpu.memory_space<vmem>>, vector<1x128xf32>
    tpu.vector_store %arg8[%c0_23, %c0_24], %42 {strides = array<i32>} : memref<1x128xf32, #tpu.memory_space<vmem>>, vector<1x128xf32>,
    return
  }
  func.func @transform_0(%arg0: i32) -> (i32, i32) {
    %c0_i32 = arith.constant 0 : i32
    %c0_i32_0 = arith.constant 0 : i32
    return %arg0, %c0_i32 : i32, i32
  }
  func.func @transform_1(%arg0: i32) -> (i32, i32) {
    %c0_i32 = arith.constant 0 : i32
    %c0_i32_0 = arith.constant 0 : i32
    %c0_i32_1 = arith.constant 0 : i32
    return %c0_i32, %c0_i32_0 : i32, i32
  }
  func.func @transform_2(%arg0: i32) -> (i32, i32) {
    %c0_i32 = arith.constant 0 : i32
    %c0_i32_0 = arith.constant 0 : i32
    %c0_i32_1 = arith.constant 0 : i32
    return %c0_i32, %c0_i32_0 : i32, i32
  }
  func.func @transform_3(%arg0: i32) -> (i32, i32) {
    %c0_i32 = arith.constant 0 : i32
    %c0_i32_0 = arith.constant 0 : i32
    %c0_i32_1 = arith.constant 0 : i32
    return %c0_i32, %c0_i32_0 : i32, i32
  }
  func.func @transform_4(%arg0: i32) -> (i32, i32) {
    %c0_i32 = arith.constant 0 : i32
    %c0_i32_0 = arith.constant 0 : i32
    %c0_i32_1 = arith.constant 0 : i32
    return %c0_i32, %c0_i32_0 : i32, i32
  }
  func.func @transform_5(%arg0: i32) -> (i32, i32) {
    %c0_i32 = arith.constant 0 : i32
    %c0_i32_0 = arith.constant 0 : i32
    %c0_i32_1 = arith.constant 0 : i32
    return %c0_i32, %c0_i32_0 : i32, i32
  }
  func.func @transform_6(%arg0: i32) -> (i32, i32) {
    %c0_i32 = arith.constant 0 : i32
    %c0_i32_0 = arith.constant 0 : i32
    %c0_i32_1 = arith.constant 0 : i32
    return %c0_i32, %c0_i32_0 : i32, i32
  }
  func.func @transform_7(%arg0: i32) -> (i32, i32) {
    %c0_i32 = arith.constant 0 : i32
    %c0_i32_0 = arith.constant 0 : i32
    return %c0_i32, %arg0 : i32, i32
  }
}

</mosaic_0001>

<llo_original>
// kernel: associationp_forward.1
$region0: #{associationp_forward.1}
  #allocation0 [shape = 'u32[]', space=smem, size = 0x4, offset = 0x4, fixed_abs, tag = 'smem constant byte address 0x4 - core index']
  #allocation1 [shape = 'u32[144,128]{1,0:T(1,128)}', space=vmem, size = 0x12000, scoped, tag = 'internal scratch']
  %s0 = inlined_call_operand.vmem [shape: bf16[256,16], index: 0, kind: input, shape index: {}]
  %s1 = inlined_call_operand.vmem [shape: bf16[16,512], index: 1, kind: input, shape index: {}]
  %s2 = inlined_call_operand.vmem [shape: f32[1,512], index: 2, kind: input, shape index: {}]
  %s3 = inlined_call_operand.vmem [shape: bf16[512,256], index: 3, kind: input, shape index: {}]
  %s4 = inlined_call_operand.vmem [shape: f32[1,256], index: 4, kind: input, shape index: {}]
  %s5 = inlined_call_operand.vmem [shape: bf16[256,128], index: 5, kind: input, shape index: {}]
  %s6 = inlined_call_operand.vmem [shape: f32[1,128], index: 6, kind: input, shape index: {}]
  %s7 = inlined_call_operand.vmem [shape: f32[1,128], index: 7, kind: output, shape index: {}]
  %s8 = sld [smem:[#allocation0]]
  $region38: #{associationp_forward.1} parent=0
    _
  %s10 = ssub.s32 1, %s8
  %s11 = scalar_select 0, %s10, %s8
  // Predicated region
  $region2: #{associationp_forward.1} parent=0 // pred_check
    _
  $region3: #{associationp_forward.1} parent=0 // pred_check_branch
    %13 = sbr.rel (0) target = $region5
  $region4: #{associationp_forward.1} parent=0 // pred_region
    _
  $region5: #{associationp_forward.1} parent=0 // pred_fallthru
    _
  // Predicated region
  $region6: #{associationp_forward.1} parent=0 // pred_check
    _
  $region7: #{associationp_forward.1} parent=0 // pred_check_branch
    %15 = sbr.rel (0) target = $region9
  $region8: #{associationp_forward.1} parent=0 // pred_region
    _
  $region9: #{associationp_forward.1} parent=0 // pred_fallthru
    _
  // Predicated region
  $region10: #{associationp_forward.1} parent=0 // pred_check
    _
  $region11: #{associationp_forward.1} parent=0 // pred_check_branch
    %17 = sbr.rel (0) target = $region13
  $region12: #{associationp_forward.1} parent=0 // pred_region
    _
  $region13: #{associationp_forward.1} parent=0 // pred_fallthru
    _
  // Predicated region
  $region14: #{associationp_forward.1} parent=0 // pred_check
    _
  $region15: #{associationp_forward.1} parent=0 // pred_check_branch
    %19 = sbr.rel (0) target = $region17
  $region16: #{associationp_forward.1} parent=0 // pred_region
    _
  $region17: #{associationp_forward.1} parent=0 // pred_fallthru
    _
  // Predicated region
  $region18: #{associationp_forward.1} parent=0 // pred_check
    _
  $region19: #{associationp_forward.1} parent=0 // pred_check_branch
    %21 = sbr.rel (0) target = $region21
  $region20: #{associationp_forward.1} parent=0 // pred_region
    _
  $region21: #{associationp_forward.1} parent=0 // pred_fallthru
    _
  // Predicated region
  $region22: #{associationp_forward.1} parent=0 // pred_check
    _
  $region23: #{associationp_forward.1} parent=0 // pred_check_branch
    %23 = sbr.rel (0) target = $region25
  $region24: #{associationp_forward.1} parent=0 // pred_region
    _
  $region25: #{associationp_forward.1} parent=0 // pred_fallthru
    _
  // Predicated region
  $region26: #{associationp_forward.1} parent=0 // pred_check
    _
  $region27: #{associationp_forward.1} parent=0 // pred_check_branch
    %25 = sbr.rel (0) target = $region29
  $region28: #{associationp_forward.1} parent=0 // pred_region
    _
  $region29: #{associationp_forward.1} parent=0 // pred_fallthru
    _
  %v27 = vld [vmem:[%s0] sm:$0xf]
  %v28 = vld [vmem:[%s0 + $0x4] sm:$0xf]
  %v29 = vld [vmem:[%s0 + $0x8] sm:$0xf]
  %v30 = vld [vmem:[%s0 + $0xc] sm:$0xf]
  %v31 = vld [vmem:[%s0 + $0x10] sm:$0xf]
  %v32 = vld [vmem:[%s0 + $0x14] sm:$0xf]
  %v33 = vld [vmem:[%s0 + $0x18] sm:$0xf]
  %v34 = vld [vmem:[%s0 + $0x1c] sm:$0xf]
  %v35 = vld [vmem:[%s0 + $0x20] sm:$0xf]
  %v36 = vld [vmem:[%s0 + $0x24] sm:$0xf]
  %v37 = vld [vmem:[%s0 + $0x28] sm:$0xf]
  %v38 = vld [vmem:[%s0 + $0x2c] sm:$0xf]
  %v39 = vld [vmem:[%s0 + $0x30] sm:$0xf]
  %v40 = vld [vmem:[%s0 + $0x34] sm:$0xf]
  %v41 = vld [vmem:[%s0 + $0x38] sm:$0xf]
  %v42 = vld [vmem:[%s0 + $0x3c] sm:$0xf]
  %v43 = vld [vmem:[%s0 + $0x40] sm:$0xf]
  %v44 = vld [vmem:[%s0 + $0x44] sm:$0xf]
  %v45 = vld [vmem:[%s0 + $0x48] sm:$0xf]
  %v46 = vld [vmem:[%s0 + $0x4c] sm:$0xf]
  %v47 = vld [vmem:[%s0 + $0x50] sm:$0xf]
  %v48 = vld [vmem:[%s0 + $0x54] sm:$0xf]
  %v49 = vld [vmem:[%s0 + $0x58] sm:$0xf]
  %v50 = vld [vmem:[%s0 + $0x5c] sm:$0xf]
  %v51 = vld [vmem:[%s0 + $0x60] sm:$0xf]
  %v52 = vld [vmem:[%s0 + $0x64] sm:$0xf]
  %v53 = vld [vmem:[%s0 + $0x68] sm:$0xf]
  %v54 = vld [vmem:[%s0 + $0x6c] sm:$0xf]
  %v55 = vld [vmem:[%s0 + $0x70] sm:$0xf]
  %v56 = vld [vmem:[%s0 + $0x74] sm:$0xf]
  %v57 = vld [vmem:[%s0 + $0x78] sm:$0xf]
  %v58 = vld [vmem:[%s0 + $0x7c] sm:$0xf]
  %v59 = vld [vmem:[%s1] sm:$0xff]
  %v60 = vld [vmem:[%s1 + $0x8] sm:$0xff]
  %v61 = vld [vmem:[%s1 + $0x10] sm:$0xff]
  %v62 = vld [vmem:[%s1 + $0x18] sm:$0xff]
  %v63 = vld [vmem:[%s2] sm:$0xf]
  %v65 = vlaneseq
  %v66 = vshrl.u32 %v65, 7
  %v67 = vsub.s32 0, %v66
  %v68 = vrot.slane %v63, %v67
  %v69 = vlaneseq
  %v70 = vshrl.u32 %v69, 7
  %v71 = vsub.s32 1, %v70
  %v72 = vrot.slane %v63, %v71
  %v73 = vlaneseq
  %v74 = vshrl.u32 %v73, 7
  %v75 = vsub.s32 2, %v74
  %v76 = vrot.slane %v63, %v75
  %v77 = vlaneseq
  %v78 = vshrl.u32 %v77, 7
  %v79 = vsub.s32 3, %v78
  %v80 = vrot.slane %v63, %v79
  %v117 = vunpack.c.l.b16 %v27
  %v118 = vunpack.c.l.b16 %v28
  %v119 = vunpack.c.l.b16 %v29
  %v120 = vunpack.c.l.b16 %v30
  %v121 = vunpack.c.l.b16 %v31
  %v122 = vunpack.c.l.b16 %v32
  %v123 = vunpack.c.l.b16 %v33
  %v124 = vunpack.c.l.b16 %v34
  %v125 = vunpack.c.l.b16 %v35
  %v126 = vunpack.c.l.b16 %v36
  %v127 = vunpack.c.l.b16 %v37
  %v128 = vunpack.c.l.b16 %v38
  %v129 = vunpack.c.l.b16 %v39
  %v130 = vunpack.c.l.b16 %v40
  %v131 = vunpack.c.l.b16 %v41
  %v132 = vunpack.c.l.b16 %v42
  %v133 = vunpack.c.l.b16 %v43
  %v134 = vunpack.c.l.b16 %v44
  %v135 = vunpack.c.l.b16 %v45
  %v136 = vunpack.c.l.b16 %v46
  %v137 = vunpack.c.l.b16 %v47
  %v138 = vunpack.c.l.b16 %v48
  %v139 = vunpack.c.l.b16 %v49
  %v140 = vunpack.c.l.b16 %v50
  %v141 = vunpack.c.l.b16 %v51
  %v142 = vunpack.c.l.b16 %v52
  %v143 = vunpack.c.l.b16 %v53
  %v144 = vunpack.c.l.b16 %v54
  %v145 = vunpack.c.l.b16 %v55
  %v146 = vunpack.c.l.b16 %v56
  %v147 = vunpack.c.l.b16 %v57
  %v148 = vunpack.c.l.b16 %v58
  %v149 = vpack.c.b16 %v118, %v117
  %v150 = vpack.c.b16 %v120, %v119
  %v151 = vpack.c.b16 %v122, %v121
  %v152 = vpack.c.b16 %v124, %v123
  %v153 = vpack.c.b16 %v126, %v125
  %v154 = vpack.c.b16 %v128, %v127
  %v155 = vpack.c.b16 %v130, %v129
  %v156 = vpack.c.b16 %v132, %v131
  %v157 = vpack.c.b16 %v134, %v133
  %v158 = vpack.c.b16 %v136, %v135
  %v159 = vpack.c.b16 %v138, %v137
  %v160 = vpack.c.b16 %v140, %v139
  %v161 = vpack.c.b16 %v142, %v141
  %v162 = vpack.c.b16 %v144, %v143
  %v163 = vpack.c.b16 %v146, %v145
  %v164 = vpack.c.b16 %v148, %v147
  %v169 = vunpack.c.l.b16 %v59
  %v170 = vunpack.c.h.b16 %v59
  %v171 = vunpack.c.l.b16 %v60
  %v172 = vunpack.c.h.b16 %v60
  %v173 = vunpack.c.l.b16 %v61
  %v174 = vunpack.c.h.b16 %v61
  %v175 = vunpack.c.l.b16 %v62
  %v176 = vunpack.c.h.b16 %v62
  %v177 = vpack.c.b16 %v173, %v169
  %v178 = vpack.c.b16 %v174, %v170
  %v179 = vpack.c.b16 %v175, %v171
  %v180 = vpack.c.b16 %v176, %v172
  %vm185 = vcmask 130048
  %v187 = vsel %vm185, %v149, 0
  %v190 = vsel %vm185, %v150, 0
  %v193 = vsel %vm185, %v151, 0
  %v196 = vsel %vm185, %v152, 0
  %v199 = vsel %vm185, %v153, 0
  %v202 = vsel %vm185, %v154, 0
  %v205 = vsel %vm185, %v155, 0
  %v208 = vsel %vm185, %v156, 0
  %v211 = vsel %vm185, %v157, 0
  %v214 = vsel %vm185, %v158, 0
  %v217 = vsel %vm185, %v159, 0
  %v220 = vsel %vm185, %v160, 0
  %v223 = vsel %vm185, %v161, 0
  %v226 = vsel %vm185, %v162, 0
  %v229 = vsel %vm185, %v163, 0
  %v232 = vsel %vm185, %v164, 0
  %234 = vmatprep.subr.bf16.mxu0 %v178
  %235 = vmatpush1.bf16.msra.mxu0 %v177
  %236 = vmatprep.subr.bf16.mxu0 0
  %237 = vmatpush1.bf16.msra.mxu0 0
  %238 = vmatprep.subr.bf16.mxu0 0
  %239 = vmatpush1.bf16.msra.mxu0 0
  %240 = vmatprep.subr.bf16.mxu0 0
  %241 = vmatpush1.bf16.msra.mxu0 0
  %242 = vmatprep.subr.bf16.mxu0 0
  %243 = vmatpush1.bf16.msra.mxu0 0
  %244 = vmatprep.subr.bf16.mxu0 0
  %245 = vmatpush1.bf16.msra.mxu0 0
  %246 = vmatprep.subr.bf16.mxu0 0
  %247 = vmatpush1.bf16.msra.mxu0 0
  %248 = vmatprep.subr.bf16.mxu0 0
  %249 = vmatpush1.bf16.msra.mxu0 0
  %250 = vmatprep.subr.bf16.mxu0 0
  %251 = vmatpush1.bf16.msra.mxu0 0
  %252 = vmatprep.subr.bf16.mxu0 0
  %253 = vmatpush1.bf16.msra.mxu0 0
  %254 = vmatprep.subr.bf16.mxu0 0
  %255 = vmatpush1.bf16.msra.mxu0 0
  %256 = vmatprep.subr.bf16.mxu0 0
  %257 = vmatpush1.bf16.msra.mxu0 0
  %258 = vmatprep.subr.bf16.mxu0 0
  %259 = vmatpush1.bf16.msra.mxu0 0
  %260 = vmatprep.subr.bf16.mxu0 0
  %261 = vmatpush1.bf16.msra.mxu0 0
  %262 = vmatprep.subr.bf16.mxu0 0
  %263 = vmatpush1.bf16.msra.mxu0 0
  %264 = vmatprep.subr.bf16.mxu0 0
  %265 = vmatpush1.bf16.msra.mxu0 0
  %266 = vmatprep.mubr.bf16.mxu0 0
  %267 = vmatmul.mubr.bf16.gmra.mrb[0].mxu0 %v187
  %v268 = vpop.f32.mrb[0].mxu0
  %v269 = vadd.f32 %v68, %v268
  %v270 = vpop.f32.mrb[0].mxu0
  %v271 = vadd.f32 %v72, %v270
  %v272 = vpop.f32.mrb[0].mxu0
  %v273 = vadd.f32 %v68, %v272
  %v274 = vpop.f32.mrb[0].mxu0
  %v275 = vadd.f32 %v72, %v274
  %276 = vmatprep.mubr.bf16.mxu0 0
  %277 = vmatmul.mubr.bf16.gmra.mrb[0].mxu0 %v190
  %v278 = vpop.f32.mrb[0].mxu0
  %v279 = vadd.f32 %v68, %v278
  %v280 = vpop.f32.mrb[0].mxu0
  %v281 = vadd.f32 %v72, %v280
  %v282 = vpop.f32.mrb[0].mxu0
  %v283 = vadd.f32 %v68, %v282
  %v284 = vpop.f32.mrb[0].mxu0
  %v285 = vadd.f32 %v72, %v284
  %286 = vmatprep.mubr.bf16.mxu0 0
  %287 = vmatmul.mubr.bf16.gmra.mrb[0].mxu0 %v193
  %v288 = vpop.f32.mrb[0].mxu0
  %v289 = vadd.f32 %v68, %v288
  %v290 = vpop.f32.mrb[0].mxu0
  %v291 = vadd.f32 %v72, %v290
  %v292 = vpop.f32.mrb[0].mxu0
  %v293 = vadd.f32 %v68, %v292
  %v294 = vpop.f32.mrb[0].mxu0
  %v295 = vadd.f32 %v72, %v294
  %296 = vmatprep.mubr.bf16.mxu0 0
  %297 = vmatmul.mubr.bf16.gmra.mrb[0].mxu0 %v196
  %v298 = vpop.f32.mrb[0].mxu0
  %v299 = vadd.f32 %v68, %v298
  %v300 = vpop.f32.mrb[0].mxu0
  %v301 = vadd.f32 %v72, %v300
  %v302 = vpop.f32.mrb[0].mxu0
  %v303 = vadd.f32 %v68, %v302
  %v304 = vpop.f32.mrb[0].mxu0
  %v305 = vadd.f32 %v72, %v304
  %306 = vmatprep.mubr.bf16.mxu0 0
  %307 = vmatmul.mubr.bf16.gmra.mrb[0].mxu0 %v199
  %v308 = vpop.f32.mrb[0].mxu0
  %v309 = vadd.f32 %v68, %v308
  %v310 = vpop.f32.mrb[0].mxu0
  %v311 = vadd.f32 %v72, %v310
  %v312 = vpop.f32.mrb[0].mxu0
  %v313 = vadd.f32 %v68, %v312
  %v314 = vpop.f32.mrb[0].mxu0
  %v315 = vadd.f32 %v72, %v314
  %316 = vmatprep.mubr.bf16.mxu0 0
  %317 = vmatmul.mubr.bf16.gmra.mrb[0].mxu0 %v202
  %v318 = vpop.f32.mrb[0].mxu0
  %v319 = vadd.f32 %v68, %v318
  %v320 = vpop.f32.mrb[0].mxu0
  %v321 = vadd.f32 %v72, %v320
  %v322 = vpop.f32.mrb[0].mxu0
  %v323 = vadd.f32 %v68, %v322
  %v324 = vpop.f32.mrb[0].mxu0
  %v325 = vadd.f32 %v72, %v324
  %326 = vmatprep.mubr.bf16.mxu0 0
  %327 = vmatmul.mubr.bf16.gmra.mrb[0].mxu0 %v205
  %v328 = vpop.f32.mrb[0].mxu0
  %v329 = vadd.f32 %v68, %v328
  %v330 = vpop.f32.mrb[0].mxu0
  %v331 = vadd.f32 %v72, %v330
  %v332 = vpop.f32.mrb[0].mxu0
  %v333 = vadd.f32 %v68, %v332
  %v334 = vpop.f32.mrb[0].mxu0
  %v335 = vadd.f32 %v72, %v334
  %336 = vmatprep.mubr.bf16.mxu0 0
  %337 = vmatmul.mubr.bf16.gmra.mrb[0].mxu0 %v208
  %v338 = vpop.f32.mrb[0].mxu0
  %v339 = vadd.f32 %v68, %v338
  %v340 = vpop.f32.mrb[0].mxu0
  %v341 = vadd.f32 %v72, %v340
  %v342 = vpop.f32.mrb[0].mxu0
  %v343 = vadd.f32 %v68, %v342
  %v344 = vpop.f32.mrb[0].mxu0
  %v345 = vadd.f32 %v72, %v344
  %346 = vmatprep.mubr.bf16.mxu0 0
  %347 = vmatmul.mubr.bf16.gmra.mrb[0].mxu0 %v211
  %v348 = vpop.f32.mrb[0].mxu0
  %v349 = vadd.f32 %v68, %v348
  %v350 = vpop.f32.mrb[0].mxu0
  %v351 = vadd.f32 %v72, %v350
  %v352 = vpop.f32.mrb[0].mxu0
  %v353 = vadd.f32 %v68, %v352
  %v354 = vpop.f32.mrb[0].mxu0
  %v355 = vadd.f32 %v72, %v354
  %356 = vmatprep.mubr.bf16.mxu0 0
  %357 = vmatmul.mubr.bf16.gmra.mrb[0].mxu0 %v214
  %v358 = vpop.f32.mrb[0].mxu0
  %v359 = vadd.f32 %v68, %v358
  %v360 = vpop.f32.mrb[0].mxu0
  %v361 = vadd.f32 %v72, %v360
  %v362 = vpop.f32.mrb[0].mxu0
  %v363 = vadd.f32 %v68, %v362
  %v364 = vpop.f32.mrb[0].mxu0
  %v365 = vadd.f32 %v72, %v364
  %366 = vmatprep.mubr.bf16.mxu0 0
  %367 = vmatmul.mubr.bf16.gmra.mrb[0].mxu0 %v217
  %v368 = vpop.f32.mrb[0].mxu0
  %v369 = vadd.f32 %v68, %v368
  %v370 = vpop.f32.mrb[0].mxu0
  %v371 = vadd.f32 %v72, %v370
  %v372 = vpop.f32.mrb[0].mxu0
  %v373 = vadd.f32 %v68, %v372
  %v374 = vpop.f32.mrb[0].mxu0
  %v375 = vadd.f32 %v72, %v374
  %376 = vmatprep.mubr.bf16.mxu0 0
  %377 = vmatmul.mubr.bf16.gmra.mrb[0].mxu0 %v220
  %v378 = vpop.f32.mrb[0].mxu0
  %v379 = vadd.f32 %v68, %v378
  %v380 = vpop.f32.mrb[0].mxu0
  %v381 = vadd.f32 %v72, %v380
  %v382 = vpop.f32.mrb[0].mxu0
  %v383 = vadd.f32 %v68, %v382
  %v384 = vpop.f32.mrb[0].mxu0
  %v385 = vadd.f32 %v72, %v384
  %386 = vmatprep.mubr.bf16.mxu0 0
  %387 = vmatmul.mubr.bf16.gmra.mrb[0].mxu0 %v223
  %v388 = vpop.f32.mrb[0].mxu0
  %v389 = vadd.f32 %v68, %v388
  %v390 = vpop.f32.mrb[0].mxu0
  %v391 = vadd.f32 %v72, %v390
  %v392 = vpop.f32.mrb[0].mxu0
  %v393 = vadd.f32 %v68, %v392
  %v394 = vpop.f32.mrb[0].mxu0
  %v395 = vadd.f32 %v72, %v394
  %396 = vmatprep.mubr.bf16.mxu0 0
  %397 = vmatmul.mubr.bf16.gmra.mrb[0].mxu0 %v226
  %v398 = vpop.f32.mrb[0].mxu0
  %v399 = vadd.f32 %v68, %v398
  %v400 = vpop.f32.mrb[0].mxu0
  %v401 = vadd.f32 %v72, %v400
  %v402 = vpop.f32.mrb[0].mxu0
  %v403 = vadd.f32 %v68, %v402
  %v404 = vpop.f32.mrb[0].mxu0
  %v405 = vadd.f32 %v72, %v404
  %406 = vmatprep.mubr.bf16.mxu0 0
  %407 = vmatmul.mubr.bf16.gmra.mrb[0].mxu0 %v229
  %v408 = vpop.f32.mrb[0].mxu0
  %v409 = vadd.f32 %v68, %v408
  %v410 = vpop.f32.mrb[0].mxu0
  %v411 = vadd.f32 %v72, %v410
  %v412 = vpop.f32.mrb[0].mxu0
  %v413 = vadd.f32 %v68, %v412
  %v414 = vpop.f32.mrb[0].mxu0
  %v415 = vadd.f32 %v72, %v414
  %416 = vmatprep.mubr.bf16.mxu0 0
  %417 = vmatmul.mubr.bf16.gmra.mrb[0].mxu0 %v232
  %v418 = vpop.f32.mrb[0].mxu0
  %v419 = vadd.f32 %v68, %v418
  %v420 = vpop.f32.mrb[0].mxu0
  %v421 = vadd.f32 %v72, %v420
  %v422 = vpop.f32.mrb[0].mxu0
  %v423 = vadd.f32 %v68, %v422
  %v424 = vpop.f32.mrb[0].mxu0
  %v425 = vadd.f32 %v72, %v424
  %426 = vdwg.mxu0
  %427 = vmatprep.subr.bf16.mxu0 %v180
  %428 = vmatpush1.bf16.msra.mxu0 %v179
  %429 = vmatprep.subr.bf16.mxu0 0
  %430 = vmatpush1.bf16.msra.mxu0 0
  %431 = vmatprep.subr.bf16.mxu0 0
  %432 = vmatpush1.bf16.msra.mxu0 0
  %433 = vmatprep.subr.bf16.mxu0 0
  %434 = vmatpush1.bf16.msra.mxu0 0
  %435 = vmatprep.subr.bf16.mxu0 0
  %436 = vmatpush1.bf16.msra.mxu0 0
  %437 = vmatprep.subr.bf16.mxu0 0
  %438 = vmatpush1.bf16.msra.mxu0 0
  %439 = vmatprep.subr.bf16.mxu0 0
  %440 = vmatpush1.bf16.msra.mxu0 0
  %441 = vmatprep.subr.bf16.mxu0 0
  %442 = vmatpush1.bf16.msra.mxu0 0
  %443 = vmatprep.subr.bf16.mxu0 0
  %444 = vmatpush1.bf16.msra.mxu0 0
  %445 = vmatprep.subr.bf16.mxu0 0
  %446 = vmatpush1.bf16.msra.mxu0 0
  %447 = vmatprep.subr.bf16.mxu0 0
  %448 = vmatpush1.bf16.msra.mxu0 0
  %449 = vmatprep.subr.bf16.mxu0 0
  %450 = vmatpush1.bf16.msra.mxu0 0
  %451 = vmatprep.subr.bf16.mxu0 0
  %452 = vmatpush1.bf16.msra.mxu0 0
  %453 = vmatprep.subr.bf16.mxu0 0
  %454 = vmatpush1.bf16.msra.mxu0 0
  %455 = vmatprep.subr.bf16.mxu0 0
  %456 = vmatpush1.bf16.msra.mxu0 0
  %457 = vmatprep.subr.bf16.mxu0 0
  %458 = vmatpush1.bf16.msra.mxu0 0
  %459 = vmatprep.mubr.bf16.mxu0 0
  %460 = vmatmul.mubr.bf16.gmra.mrb[0].mxu0 %v187
  %v461 = vpop.f32.mrb[0].mxu0
  %v462 = vadd.f32 %v76, %v461
  %v463 = vpop.f32.mrb[0].mxu0
  %v464 = vadd.f32 %v80, %v463
  %v465 = vpop.f32.mrb[0].mxu0
  %v466 = vadd.f32 %v76, %v465
  %v467 = vpop.f32.mrb[0].mxu0
  %v468 = vadd.f32 %v80, %v467
  %469 = vmatprep.mubr.bf16.mxu0 0
  %470 = vmatmul.mubr.bf16.gmra.mrb[0].mxu0 %v190
  %v471 = vpop.f32.mrb[0].mxu0
  %v472 = vadd.f32 %v76, %v471
  %v473 = vpop.f32.mrb[0].mxu0
  %v474 = vadd.f32 %v80, %v473
  %v475 = vpop.f32.mrb[0].mxu0
  %v476 = vadd.f32 %v76, %v475
  %v477 = vpop.f32.mrb[0].mxu0
  %v478 = vadd.f32 %v80, %v477
  %479 = vmatprep.mubr.bf16.mxu0 0
  %480 = vmatmul.mubr.bf16.gmra.mrb[0].mxu0 %v193
  %v481 = vpop.f32.mrb[0].mxu0
  %v482 = vadd.f32 %v76, %v481
  %v483 = vpop.f32.mrb[0].mxu0
  %v484 = vadd.f32 %v80, %v483
  %v485 = vpop.f32.mrb[0].mxu0
  %v486 = vadd.f32 %v76, %v485
  %v487 = vpop.f32.mrb[0].mxu0
  %v488 = vadd.f32 %v80, %v487
  %489 = vmatprep.mubr.bf16.mxu0 0
  %490 = vmatmul.mubr.bf16.gmra.mrb[0].mxu0 %v196
  %v491 = vpop.f32.mrb[0].mxu0
  %v492 = vadd.f32 %v76, %v491
  %v493 = vpop.f32.mrb[0].mxu0
  %v494 = vadd.f32 %v80, %v493
  %v495 = vpop.f32.mrb[0].mxu0
  %v496 = vadd.f32 %v76, %v495
  %v497 = vpop.f32.mrb[0].mxu0
  %v498 = vadd.f32 %v80, %v497
  %499 = vmatprep.mubr.bf16.mxu0 0
  %500 = vmatmul.mubr.bf16.gmra.mrb[0].mxu0 %v199
  %v501 = vpop.f32.mrb[0].mxu0
  %v502 = vadd.f32 %v76, %v501
  %v503 = vpop.f32.mrb[0].mxu0
  %v504 = vadd.f32 %v80, %v503
  %v505 = vpop.f32.mrb[0].mxu0
  %v506 = vadd.f32 %v76, %v505
  %v507 = vpop.f32.mrb[0].mxu0
  %v508 = vadd.f32 %v80, %v507
  %509 = vmatprep.mubr.bf16.mxu0 0
  %510 = vmatmul.mubr.bf16.gmra.mrb[0].mxu0 %v202
  %v511 = vpop.f32.mrb[0].mxu0
  %v512 = vadd.f32 %v76, %v511
  %v513 = vpop.f32.mrb[0].mxu0
  %v514 = vadd.f32 %v80, %v513
  %v515 = vpop.f32.mrb[0].mxu0
  %v516 = vadd.f32 %v76, %v515
  %v517 = vpop.f32.mrb[0].mxu0
  %v518 = vadd.f32 %v80, %v517
  %519 = vmatprep.mubr.bf16.mxu0 0
  %520 = vmatmul.mubr.bf16.gmra.mrb[0].mxu0 %v205
  %v521 = vpop.f32.mrb[0].mxu0
  %v522 = vadd.f32 %v76, %v521
  %v523 = vpop.f32.mrb[0].mxu0
  %v524 = vadd.f32 %v80, %v523
  %v525 = vpop.f32.mrb[0].mxu0
  %v526 = vadd.f32 %v76, %v525
  %v527 = vpop.f32.mrb[0].mxu0
  %v528 = vadd.f32 %v80, %v527
  %529 = vmatprep.mubr.bf16.mxu0 0
  %530 = vmatmul.mubr.bf16.gmra.mrb[0].mxu0 %v208
  %v531 = vpop.f32.mrb[0].mxu0
  %v532 = vadd.f32 %v76, %v531
  %v533 = vpop.f32.mrb[0].mxu0
  %v534 = vadd.f32 %v80, %v533
  %v535 = vpop.f32.mrb[0].mxu0
  %v536 = vadd.f32 %v76, %v535
  %v537 = vpop.f32.mrb[0].mxu0
  %v538 = vadd.f32 %v80, %v537
  %539 = vmatprep.mubr.bf16.mxu0 0
  %540 = vmatmul.mubr.bf16.gmra.mrb[0].mxu0 %v211
  %v541 = vpop.f32.mrb[0].mxu0
  %v542 = vadd.f32 %v76, %v541
  %v543 = vpop.f32.mrb[0].mxu0
  %v544 = vadd.f32 %v80, %v543
  %v545 = vpop.f32.mrb[0].mxu0
  %v546 = vadd.f32 %v76, %v545
  %v547 = vpop.f32.mrb[0].mxu0
  %v548 = vadd.f32 %v80, %v547
  %549 = vmatprep.mubr.bf16.mxu0 0
  %550 = vmatmul.mubr.bf16.gmra.mrb[0].mxu0 %v214
  %v551 = vpop.f32.mrb[0].mxu0
  %v552 = vadd.f32 %v76, %v551
  %v553 = vpop.f32.mrb[0].mxu0
  %v554 = vadd.f32 %v80, %v553
  %v555 = vpop.f32.mrb[0].mxu0
  %v556 = vadd.f32 %v76, %v555
  %v557 = vpop.f32.mrb[0].mxu0
  %v558 = vadd.f32 %v80, %v557
  %559 = vmatprep.mubr.bf16.mxu0 0
  %560 = vmatmul.mubr.bf16.gmra.mrb[0].mxu0 %v217
  %v561 = vpop.f32.mrb[0].mxu0
  %v562 = vadd.f32 %v76, %v561
  %v563 = vpop.f32.mrb[0].mxu0
  %v564 = vadd.f32 %v80, %v563
  %v565 = vpop.f32.mrb[0].mxu0
  %v566 = vadd.f32 %v76, %v565
  %v567 = vpop.f32.mrb[0].mxu0
  %v568 = vadd.f32 %v80, %v567
  %569 = vmatprep.mubr.bf16.mxu0 0
  %570 = vmatmul.mubr.bf16.gmra.mrb[0].mxu0 %v220
  %v571 = vpop.f32.mrb[0].mxu0
  %v572 = vadd.f32 %v76, %v571
  %v573 = vpop.f32.mrb[0].mxu0
  %v574 = vadd.f32 %v80, %v573
  %v575 = vpop.f32.mrb[0].mxu0
  %v576 = vadd.f32 %v76, %v575
  %v577 = vpop.f32.mrb[0].mxu0
  %v578 = vadd.f32 %v80, %v577
  %579 = vmatprep.mubr.bf16.mxu0 0
  %580 = vmatmul.mubr.bf16.gmra.mrb[0].mxu0 %v223
  %v581 = vpop.f32.mrb[0].mxu0
  %v582 = vadd.f32 %v76, %v581
  %v583 = vpop.f32.mrb[0].mxu0
  %v584 = vadd.f32 %v80, %v583
  %v585 = vpop.f32.mrb[0].mxu0
  %v586 = vadd.f32 %v76, %v585
  %v587 = vpop.f32.mrb[0].mxu0
  %v588 = vadd.f32 %v80, %v587
  %589 = vmatprep.mubr.bf16.mxu0 0
  %590 = vmatmul.mubr.bf16.gmra.mrb[0].mxu0 %v226
  %v591 = vpop.f32.mrb[0].mxu0
  %v592 = vadd.f32 %v76, %v591
  %v593 = vpop.f32.mrb[0].mxu0
  %v594 = vadd.f32 %v80, %v593
  %v595 = vpop.f32.mrb[0].mxu0
  %v596 = vadd.f32 %v76, %v595
  %v597 = vpop.f32.mrb[0].mxu0
  %v598 = vadd.f32 %v80, %v597
  %599 = vmatprep.mubr.bf16.mxu0 0
  %600 = vmatmul.mubr.bf16.gmra.mrb[0].mxu0 %v229
  %v601 = vpop.f32.mrb[0].mxu0
  %v602 = vadd.f32 %v76, %v601
  %v603 = vpop.f32.mrb[0].mxu0
  %v604 = vadd.f32 %v80, %v603
  %v605 = vpop.f32.mrb[0].mxu0
  %v606 = vadd.f32 %v76, %v605
  %v607 = vpop.f32.mrb[0].mxu0
  %v608 = vadd.f32 %v80, %v607
  %609 = vmatprep.mubr.bf16.mxu0 0
  %610 = vmatmul.mubr.bf16.gmra.mrb[0].mxu0 %v232
  %v611 = vpop.f32.mrb[0].mxu0
  %v612 = vadd.f32 %v76, %v611
  %v613 = vpop.f32.mrb[0].mxu0
  %v614 = vadd.f32 %v80, %v613
  %v615 = vpop.f32.mrb[0].mxu0
  %v616 = vadd.f32 %v76, %v615
  %v617 = vpop.f32.mrb[0].mxu0
  %v618 = vadd.f32 %v80, %v617
  %619 = vdwg.mxu0
  %v620 = vmax.f32 %v269, 0.0
  %v621 = vmax.f32 %v271, 0.0
  %v622 = vmax.f32 %v462, 0.0
  %v623 = vmax.f32 %v464, 0.0
  %v624 = vmax.f32 %v273, 0.0
  %v625 = vmax.f32 %v275, 0.0
  %v626 = vmax.f32 %v466, 0.0
  %v627 = vmax.f32 %v468, 0.0
  %v628 = vmax.f32 %v279, 0.0
  %v629 = vmax.f32 %v281, 0.0
  %v630 = vmax.f32 %v472, 0.0
  %v631 = vmax.f32 %v474, 0.0
  %v632 = vmax.f32 %v283, 0.0
  %v633 = vmax.f32 %v285, 0.0
  %v634 = vmax.f32 %v476, 0.0
  %v635 = vmax.f32 %v478, 0.0
  %v636 = vmax.f32 %v289, 0.0
  %v637 = vmax.f32 %v291, 0.0
  %v638 = vmax.f32 %v482, 0.0
  %v639 = vmax.f32 %v484, 0.0
  %v640 = vmax.f32 %v293, 0.0
  %v641 = vmax.f32 %v295, 0.0
  %v642 = vmax.f32 %v486, 0.0
  %v643 = vmax.f32 %v488, 0.0
  %v644 = vmax.f32 %v299, 0.0
  %v645 = vmax.f32 %v301, 0.0
  %v646 = vmax.f32 %v492, 0.0
  %v647 = vmax.f32 %v494, 0.0
  %v648 = vmax.f32 %v303, 0.0
  %v649 = vmax.f32 %v305, 0.0
  %v650 = vmax.f32 %v496, 0.0
  %v651 = vmax.f32 %v498, 0.0
  %v652 = vmax.f32 %v309, 0.0
  %v653 = vmax.f32 %v311, 0.0
  %v654 = vmax.f32 %v502, 0.0
  %v655 = vmax.f32 %v504, 0.0
  %v656 = vmax.f32 %v313, 0.0
  %v657 = vmax.f32 %v315, 0.0
  %v658 = vmax.f32 %v506, 0.0
  %v659 = vmax.f32 %v508, 0.0
  %v660 = vmax.f32 %v319, 0.0
  %v661 = vmax.f32 %v321, 0.0
  %v662 = vmax.f32 %v512, 0.0
  %v663 = vmax.f32 %v514, 0.0
  %v664 = vmax.f32 %v323, 0.0
  %v665 = vmax.f32 %v325, 0.0
  %v666 = vmax.f32 %v516, 0.0
  %v667 = vmax.f32 %v518, 0.0
  %v668 = vmax.f32 %v329, 0.0
  %v669 = vmax.f32 %v331, 0.0
  %v670 = vmax.f32 %v522, 0.0
  %v671 = vmax.f32 %v524, 0.0
  %v672 = vmax.f32 %v333, 0.0
  %v673 = vmax.f32 %v335, 0.0
  %v674 = vmax.f32 %v526, 0.0
  %v675 = vmax.f32 %v528, 0.0
  %v676 = vmax.f32 %v339, 0.0
  %v677 = vmax.f32 %v341, 0.0
  %v678 = vmax.f32 %v532, 0.0
  %v679 = vmax.f32 %v534, 0.0
  %v680 = vmax.f32 %v343, 0.0
  %v681 = vmax.f32 %v345, 0.0
  %v682 = vmax.f32 %v536, 0.0
  %v683 = vmax.f32 %v538, 0.0
  %v684 = vmax.f32 %v349, 0.0
  %v685 = vmax.f32 %v351, 0.0
  %v686 = vmax.f32 %v542, 0.0
  %v687 = vmax.f32 %v544, 0.0
  %v688 = vmax.f32 %v353, 0.0
  %v689 = vmax.f32 %v355, 0.0
  %v690 = vmax.f32 %v546, 0.0
  %v691 = vmax.f32 %v548, 0.0
  %v692 = vmax.f32 %v359, 0.0
  %v693 = vmax.f32 %v361, 0.0
  %v694 = vmax.f32 %v552, 0.0
  %v695 = vmax.f32 %v554, 0.0
  %v696 = vmax.f32 %v363, 0.0
  %v697 = vmax.f32 %v365, 0.0
  %v698 = vmax.f32 %v556, 0.0
  %v699 = vmax.f32 %v558, 0.0
  %v700 = vmax.f32 %v369, 0.0
  %v701 = vmax.f32 %v371, 0.0
  %v702 = vmax.f32 %v562, 0.0
  %v703 = vmax.f32 %v564, 0.0
  %v704 = vmax.f32 %v373, 0.0
  %v705 = vmax.f32 %v375, 0.0
  %v706 = vmax.f32 %v566, 0.0
  %v707 = vmax.f32 %v568, 0.0
  %v708 = vmax.f32 %v379, 0.0
  %v709 = vmax.f32 %v381, 0.0
  %v710 = vmax.f32 %v572, 0.0
  %v711 = vmax.f32 %v574, 0.0
  %v712 = vmax.f32 %v383, 0.0
  %v713 = vmax.f32 %v385, 0.0
  %v714 = vmax.f32 %v576, 0.0
  %v715 = vmax.f32 %v578, 0.0
  %v716 = vmax.f32 %v389, 0.0
  %v717 = vmax.f32 %v391, 0.0
  %v718 = vmax.f32 %v582, 0.0
  %v719 = vmax.f32 %v584, 0.0
  %v720 = vmax.f32 %v393, 0.0
  %v721 = vmax.f32 %v395, 0.0
  %v722 = vmax.f32 %v586, 0.0
  %v723 = vmax.f32 %v588, 0.0
  %v724 = vmax.f32 %v399, 0.0
  %v725 = vmax.f32 %v401, 0.0
  %v726 = vmax.f32 %v592, 0.0
  %v727 = vmax.f32 %v594, 0.0
  %v728 = vmax.f32 %v403, 0.0
  %v729 = vmax.f32 %v405, 0.0
  %v730 = vmax.f32 %v596, 0.0
  %v731 = vmax.f32 %v598, 0.0
  %v732 = vmax.f32 %v409, 0.0
  %v733 = vmax.f32 %v411, 0.0
  %v734 = vmax.f32 %v602, 0.0
  %v735 = vmax.f32 %v604, 0.0
  %v736 = vmax.f32 %v413, 0.0
  %v737 = vmax.f32 %v415, 0.0
  %v738 = vmax.f32 %v606, 0.0
  %v739 = vmax.f32 %v608, 0.0
  %v740 = vmax.f32 %v419, 0.0
  %v741 = vmax.f32 %v421, 0.0
  %v742 = vmax.f32 %v612, 0.0
  %v743 = vmax.f32 %v614, 0.0
  %v744 = vmax.f32 %v423, 0.0
  %v745 = vmax.f32 %v425, 0.0
  %v746 = vmax.f32 %v616, 0.0
  %v747 = vmax.f32 %v618, 0.0
  %v748 = vpack.c.bf16 %v624, %v620
  %v749 = vpack.c.bf16 %v625, %v621
  %v750 = vpack.c.bf16 %v626, %v622
  %v751 = vpack.c.bf16 %v627, %v623
  %v752 = vpack.c.bf16 %v632, %v628
  %v753 = vpack.c.bf16 %v633, %v629
  %v754 = vpack.c.bf16 %v634, %v630
  %v755 = vpack.c.bf16 %v635, %v631
  %v756 = vpack.c.bf16 %v640, %v636
  %v757 = vpack.c.bf16 %v641, %v637
  %v758 = vpack.c.bf16 %v642, %v638
  %v759 = vpack.c.bf16 %v643, %v639
  %v760 = vpack.c.bf16 %v648, %v644
  %v761 = vpack.c.bf16 %v649, %v645
  %v762 = vpack.c.bf16 %v650, %v646
  %v763 = vpack.c.bf16 %v651, %v647
  %v764 = vpack.c.bf16 %v656, %v652
  %v765 = vpack.c.bf16 %v657, %v653
  %v766 = vpack.c.bf16 %v658, %v654
  %v767 = vpack.c.bf16 %v659, %v655
  %v768 = vpack.c.bf16 %v664, %v660
  %v769 = vpack.c.bf16 %v665, %v661
  %v770 = vpack.c.bf16 %v666, %v662
  %v771 = vpack.c.bf16 %v667, %v663
  %v772 = vpack.c.bf16 %v672, %v668
  %v773 = vpack.c.bf16 %v673, %v669
  %v774 = vpack.c.bf16 %v674, %v670
  %v775 = vpack.c.bf16 %v675, %v671
  %v776 = vpack.c.bf16 %v680, %v676
  %v777 = vpack.c.bf16 %v681, %v677
  %v778 = vpack.c.bf16 %v682, %v678
  %v779 = vpack.c.bf16 %v683, %v679
  %v780 = vpack.c.bf16 %v688, %v684
  %v781 = vpack.c.bf16 %v689, %v685
  %v782 = vpack.c.bf16 %v690, %v686
  %v783 = vpack.c.bf16 %v691, %v687
  %v784 = vpack.c.bf16 %v696, %v692
  %v785 = vpack.c.bf16 %v697, %v693
  %v786 = vpack.c.bf16 %v698, %v694
  %v787 = vpack.c.bf16 %v699, %v695
  %v788 = vpack.c.bf16 %v704, %v700
  %v789 = vpack.c.bf16 %v705, %v701
  %v790 = vpack.c.bf16 %v706, %v702
  %v791 = vpack.c.bf16 %v707, %v703
  %v792 = vpack.c.bf16 %v712, %v708
  %v793 = vpack.c.bf16 %v713, %v709
  %v794 = vpack.c.bf16 %v714, %v710
  %v795 = vpack.c.bf16 %v715, %v711
  %v796 = vpack.c.bf16 %v720, %v716
  %v797 = vpack.c.bf16 %v721, %v717
  %v798 = vpack.c.bf16 %v722, %v718
  %v799 = vpack.c.bf16 %v723, %v719
  %v800 = vpack.c.bf16 %v728, %v724
  %v801 = vpack.c.bf16 %v729, %v725
  %v802 = vpack.c.bf16 %v730, %v726
  %v803 = vpack.c.bf16 %v731, %v727
  %v804 = vpack.c.bf16 %v736, %v732
  %v805 = vpack.c.bf16 %v737, %v733
  %v806 = vpack.c.bf16 %v738, %v734
  %v807 = vpack.c.bf16 %v739, %v735
  %v808 = vpack.c.bf16 %v744, %v740
  %v809 = vpack.c.bf16 %v745, %v741
  %v810 = vpack.c.bf16 %v746, %v742
  %v811 = vpack.c.bf16 %v747, %v743
  %v812 = vld [vmem:[%s3] sm:$0xff]
  %v813 = vld [vmem:[%s3 + $0x8] sm:$0xff]
  %v814 = vld [vmem:[%s3 + $0x10] sm:$0xff]
  %v815 = vld [vmem:[%s3 + $0x18] sm:$0xff]
  %v816 = vld [vmem:[%s3 + $0x20] sm:$0xff]
  %v817 = vld [vmem:[%s3 + $0x28] sm:$0xff]
  %v818 = vld [vmem:[%s3 + $0x30] sm:$0xff]
  %v819 = vld [vmem:[%s3 + $0x38] sm:$0xff]
  %v820 = vld [vmem:[%s3 + $0x40] sm:$0xff]
  %v821 = vld [vmem:[%s3 + $0x48] sm:$0xff]
  %v822 = vld [vmem:[%s3 + $0x50] sm:$0xff]
  %v823 = vld [vmem:[%s3 + $0x58] sm:$0xff]
  %v824 = vld [vmem:[%s3 + $0x60] sm:$0xff]
  %v825 = vld [vmem:[%s3 + $0x68] sm:$0xff]
  %v826 = vld [vmem:[%s3 + $0x70] sm:$0xff]
  %v827 = vld [vmem:[%s3 + $0x78] sm:$0xff]
  %v828 = vld [vmem:[%s3 + $0x80] sm:$0xff]
  %v829 = vld [vmem:[%s3 + $0x88] sm:$0xff]
  %v830 = vld [vmem:[%s3 + $0x90] sm:$0xff]
  %v831 = vld [vmem:[%s3 + $0x98] sm:$0xff]
  %v832 = vld [vmem:[%s3 + $0xa0] sm:$0xff]
  %v833 = vld [vmem:[%s3 + $0xa8] sm:$0xff]
  %v834 = vld [vmem:[%s3 + $0xb0] sm:$0xff]
  %v835 = vld [vmem:[%s3 + $0xb8] sm:$0xff]
  %v836 = vld [vmem:[%s3 + $0xc0] sm:$0xff]
  %v837 = vld [vmem:[%s3 + $0xc8] sm:$0xff]
  %v838 = vld [vmem:[%s3 + $0xd0] sm:$0xff]
  %v839 = vld [vmem:[%s3 + $0xd8] sm:$0xff]
  %v840 = vld [vmem:[%s3 + $0xe0] sm:$0xff]
  %v841 = vld [vmem:[%s3 + $0xe8] sm:$0xff]
  %v842 = vld [vmem:[%s3 + $0xf0] sm:$0xff]
  %v843 = vld [vmem:[%s3 + $0xf8] sm:$0xff]
  %v844 = vld [vmem:[%s3 + $0x100] sm:$0xff]
  %v845 = vld [vmem:[%s3 + $0x108] sm:$0xff]
  %v846 = vld [vmem:[%s3 + $0x110] sm:$0xff]
  %v847 = vld [vmem:[%s3 + $0x118] sm:$0xff]
  %v848 = vld [vmem:[%s3 + $0x120] sm:$0xff]
  %v849 = vld [vmem:[%s3 + $0x128] sm:$0xff]
  %v850 = vld [vmem:[%s3 + $0x130] sm:$0xff]
  %v851 = vld [vmem:[%s3 + $0x138] sm:$0xff]
  %v852 = vld [vmem:[%s3 + $0x140] sm:$0xff]
  %v853 = vld [vmem:[%s3 + $0x148] sm:$0xff]
  %v854 = vld [vmem:[%s3 + $0x150] sm:$0xff]
  %v855 = vld [vmem:[%s3 + $0x158] sm:$0xff]
  %v856 = vld [vmem:[%s3 + $0x160] sm:$0xff]
  %v857 = vld [vmem:[%s3 + $0x168] sm:$0xff]
  %v858 = vld [vmem:[%s3 + $0x170] sm:$0xff]
  %v859 = vld [vmem:[%s3 + $0x178] sm:$0xff]
  %v860 = vld [vmem:[%s3 + $0x180] sm:$0xff]
  %v861 = vld [vmem:[%s3 + $0x188] sm:$0xff]
  %v862 = vld [vmem:[%s3 + $0x190] sm:$0xff]
  %v863 = vld [vmem:[%s3 + $0x198] sm:$0xff]
  %v864 = vld [vmem:[%s3 + $0x1a0] sm:$0xff]
  %v865 = vld [vmem:[%s3 + $0x1a8] sm:$0xff]
  %v866 = vld [vmem:[%s3 + $0x1b0] sm:$0xff]
  %v867 = vld [vmem:[%s3 + $0x1b8] sm:$0xff]
  %v868 = vld [vmem:[%s3 + $0x1c0] sm:$0xff]
  %v869 = vld [vmem:[%s3 + $0x1c8] sm:$0xff]
  %v870 = vld [vmem:[%s3 + $0x1d0] sm:$0xff]
  %v871 = vld [vmem:[%s3 + $0x1d8] sm:$0xff]
  %v872 = vld [vmem:[%s3 + $0x1e0] sm:$0xff]
  %v873 = vld [vmem:[%s3 + $0x1e8] sm:$0xff]
  %v874 = vld [vmem:[%s3 + $0x1f0] sm:$0xff]
  %v875 = vld [vmem:[%s3 + $0x1f8] sm:$0xff]
  %v876 = vld [vmem:[%s4] sm:$0x3]
  %v878 = vlaneseq
  %v879 = vshrl.u32 %v878, 7
  %v880 = vsub.s32 0, %v879
  %v881 = vrot.slane %v876, %v880
  %v882 = vlaneseq
  %v883 = vshrl.u32 %v882, 7
  %v884 = vsub.s32 1, %v883
  %v885 = vrot.slane %v876, %v884
  %v952 = vunpack.c.l.b16 %v812
  %v953 = vunpack.c.h.b16 %v812
  %v954 = vunpack.c.l.b16 %v813
  %v955 = vunpack.c.h.b16 %v813
  %v956 = vunpack.c.l.b16 %v814
  %v957 = vunpack.c.h.b16 %v814
  %v958 = vunpack.c.l.b16 %v815
  %v959 = vunpack.c.h.b16 %v815
  %v960 = vunpack.c.l.b16 %v816
  %v961 = vunpack.c.h.b16 %v816
  %v962 = vunpack.c.l.b16 %v817
  %v963 = vunpack.c.h.b16 %v817
  %v964 = vunpack.c.l.b16 %v818
  %v965 = vunpack.c.h.b16 %v818
  %v966 = vunpack.c.l.b16 %v819
  %v967 = vunpack.c.h.b16 %v819
  %v968 = vunpack.c.l.b16 %v820
  %v969 = vunpack.c.h.b16 %v820
  %v970 = vunpack.c.l.b16 %v821
  %v971 = vunpack.c.h.b16 %v821
  %v972 = vunpack.c.l.b16 %v822
  %v973 = vunpack.c.h.b16 %v822
  %v974 = vunpack.c.l.b16 %v823
  %v975 = vunpack.c.h.b16 %v823
  %v976 = vunpack.c.l.b16 %v824
  %v977 = vunpack.c.h.b16 %v824
  %v978 = vunpack.c.l.b16 %v825
  %v979 = vunpack.c.h.b16 %v825
  %v980 = vunpack.c.l.b16 %v826
  %v981 = vunpack.c.h.b16 %v826
  %v982 = vunpack.c.l.b16 %v827
  %v983 = vunpack.c.h.b16 %v827
  %v984 = vunpack.c.l.b16 %v828
  %v985 = vunpack.c.h.b16 %v828
  %v986 = vunpack.c.l.b16 %v829
  %v987 = vunpack.c.h.b16 %v829
  %v988 = vunpack.c.l.b16 %v830
  %v989 = vunpack.c.h.b16 %v830
  %v990 = vunpack.c.l.b16 %v831
  %v991 = vunpack.c.h.b16 %v831
  %v992 = vunpack.c.l.b16 %v832
  %v993 = vunpack.c.h.b16 %v832
  %v994 = vunpack.c.l.b16 %v833
  %v995 = vunpack.c.h.b16 %v833
  %v996 = vunpack.c.l.b16 %v834
  %v997 = vunpack.c.h.b16 %v834
  %v998 = vunpack.c.l.b16 %v835
  %v999 = vunpack.c.h.b16 %v835
  %v1000 = vunpack.c.l.b16 %v836
  %v1001 = vunpack.c.h.b16 %v836
  %v1002 = vunpack.c.l.b16 %v837
  %v1003 = vunpack.c.h.b16 %v837
  %v1004 = vunpack.c.l.b16 %v838
  %v1005 = vunpack.c.h.b16 %v838
  %v1006 = vunpack.c.l.b16 %v839
  %v1007 = vunpack.c.h.b16 %v839
  %v1008 = vunpack.c.l.b16 %v840
  %v1009 = vunpack.c.h.b16 %v840
  %v1010 = vunpack.c.l.b16 %v841
  %v1011 = vunpack.c.h.b16 %v841
  %v1012 = vunpack.c.l.b16 %v842
  %v1013 = vunpack.c.h.b16 %v842
  %v1014 = vunpack.c.l.b16 %v843
  %v1015 = vunpack.c.h.b16 %v843
  %v1016 = vunpack.c.l.b16 %v844
  %v1017 = vunpack.c.h.b16 %v844
  %v1018 = vunpack.c.l.b16 %v845
  %v1019 = vunpack.c.h.b16 %v845
  %v1020 = vunpack.c.l.b16 %v846
  %v1021 = vunpack.c.h.b16 %v846
  %v1022 = vunpack.c.l.b16 %v847
  %v1023 = vunpack.c.h.b16 %v847
  %v1024 = vunpack.c.l.b16 %v848
  %v1025 = vunpack.c.h.b16 %v848
  %v1026 = vunpack.c.l.b16 %v849
  %v1027 = vunpack.c.h.b16 %v849
  %v1028 = vunpack.c.l.b16 %v850
  %v1029 = vunpack.c.h.b16 %v850
  %v1030 = vunpack.c.l.b16 %v851
  %v1031 = vunpack.c.h.b16 %v851
  %v1032 = vunpack.c.l.b16 %v852
  %v1033 = vunpack.c.h.b16 %v852
  %v1034 = vunpack.c.l.b16 %v853
  %v1035 = vunpack.c.h.b16 %v853
  %v1036 = vunpack.c.l.b16 %v854
  %v1037 = vunpack.c.h.b16 %v854
  %v1038 = vunpack.c.l.b16 %v855
  %v1039 = vunpack.c.h.b16 %v855
  %v1040 = vunpack.c.l.b16 %v856
  %v1041 = vunpack.c.h.b16 %v856
  %v1042 = vunpack.c.l.b16 %v857
  %v1043 = vunpack.c.h.b16 %v857
  %v1044 = vunpack.c.l.b16 %v858
  %v1045 = vunpack.c.h.b16 %v858
  %v1046 = vunpack.c.l.b16 %v859
  %v1047 = vunpack.c.h.b16 %v859
  %v1048 = vunpack.c.l.b16 %v860
  %v1049 = vunpack.c.h.b16 %v860
  %v1050 = vunpack.c.l.b16 %v861
  %v1051 = vunpack.c.h.b16 %v861
  %v1052 = vunpack.c.l.b16 %v862
  %v1053 = vunpack.c.h.b16 %v862
  %v1054 = vunpack.c.l.b16 %v863
  %v1055 = vunpack.c.h.b16 %v863
  %v1056 = vunpack.c.l.b16 %v864
  %v1057 = vunpack.c.h.b16 %v864
  %v1058 = vunpack.c.l.b16 %v865
  %v1059 = vunpack.c.h.b16 %v865
  %v1060 = vunpack.c.l.b16 %v866
  %v1061 = vunpack.c.h.b16 %v866
  %v1062 = vunpack.c.l.b16 %v867
  %v1063 = vunpack.c.h.b16 %v867
  %v1064 = vunpack.c.l.b16 %v868
  %v1065 = vunpack.c.h.b16 %v868
  %v1066 = vunpack.c.l.b16 %v869
  %v1067 = vunpack.c.h.b16 %v869
  %v1068 = vunpack.c.l.b16 %v870
  %v1069 = vunpack.c.h.b16 %v870
  %v1070 = vunpack.c.l.b16 %v871
  %v1071 = vunpack.c.h.b16 %v871
  %v1072 = vunpack.c.l.b16 %v872
  %v1073 = vunpack.c.h.b16 %v872
  %v1074 = vunpack.c.l.b16 %v873
  %v1075 = vunpack.c.h.b16 %v873
  %v1076 = vunpack.c.l.b16 %v874
  %v1077 = vunpack.c.h.b16 %v874
  %v1078 = vunpack.c.l.b16 %v875
  %v1079 = vunpack.c.h.b16 %v875
  %v1080 = vpack.c.b16 %v954, %v952
  %v1081 = vpack.c.b16 %v955, %v953
  %v1082 = vpack.c.b16 %v958, %v956
  %v1083 = vpack.c.b16 %v959, %v957
  %v1084 = vpack.c.b16 %v962, %v960
  %v1085 = vpack.c.b16 %v963, %v961
  %v1086 = vpack.c.b16 %v966, %v964
  %v1087 = vpack.c.b16 %v967, %v965
  %v1088 = vpack.c.b16 %v970, %v968
  %v1089 = vpack.c.b16 %v971, %v969
  %v1090 = vpack.c.b16 %v974, %v972
  %v1091 = vpack.c.b16 %v975, %v973
  %v1092 = vpack.c.b16 %v978, %v976
  %v1093 = vpack.c.b16 %v979, %v977
  %v1094 = vpack.c.b16 %v982, %v980
  %v1095 = vpack.c.b16 %v983, %v981
  %v1096 = vpack.c.b16 %v986, %v984
  %v1097 = vpack.c.b16 %v987, %v985
  %v1098 = vpack.c.b16 %v990, %v988
  %v1099 = vpack.c.b16 %v991, %v989
  %v1100 = vpack.c.b16 %v994, %v992
  %v1101 = vpack.c.b16 %v995, %v993
  %v1102 = vpack.c.b16 %v998, %v996
  %v1103 = vpack.c.b16 %v999, %v997
  %v1104 = vpack.c.b16 %v1002, %v1000
  %v1105 = vpack.c.b16 %v1003, %v1001
  %v1106 = vpack.c.b16 %v1006, %v1004
  %v1107 = vpack.c.b16 %v1007, %v1005
  %v1108 = vpack.c.b16 %v1010, %v1008
  %v1109 = vpack.c.b16 %v1011, %v1009
  %v1110 = vpack.c.b16 %v1014, %v1012
  %v1111 = vpack.c.b16 %v1015, %v1013
  %v1112 = vpack.c.b16 %v1018, %v1016
  %v1113 = vpack.c.b16 %v1019, %v1017
  %v1114 = vpack.c.b16 %v1022, %v1020
  %v1115 = vpack.c.b16 %v1023, %v1021
  %v1116 = vpack.c.b16 %v1026, %v1024
  %v1117 = vpack.c.b16 %v1027, %v1025
  %v1118 = vpack.c.b16 %v1030, %v1028
  %v1119 = vpack.c.b16 %v1031, %v1029
  %v1120 = vpack.c.b16 %v1034, %v1032
  %v1121 = vpack.c.b16 %v1035, %v1033
  %v1122 = vpack.c.b16 %v1038, %v1036
  %v1123 = vpack.c.b16 %v1039, %v1037
  %v1124 = vpack.c.b16 %v1042, %v1040
  %v1125 = vpack.c.b16 %v1043, %v1041
  %v1126 = vpack.c.b16 %v1046, %v1044
  %v1127 = vpack.c.b16 %v1047, %v1045
  %v1128 = vpack.c.b16 %v1050, %v1048
  %v1129 = vpack.c.b16 %v1051, %v1049
  %v1130 = vpack.c.b16 %v1054, %v1052
  %v1131 = vpack.c.b16 %v1055, %v1053
  %v1132 = vpack.c.b16 %v1058, %v1056
  %v1133 = vpack.c.b16 %v1059, %v1057
  %v1134 = vpack.c.b16 %v1062, %v1060
  %v1135 = vpack.c.b16 %v1063, %v1061
  %v1136 = vpack.c.b16 %v1066, %v1064
  %v1137 = vpack.c.b16 %v1067, %v1065
  %v1138 = vpack.c.b16 %v1070, %v1068
  %v1139 = vpack.c.b16 %v1071, %v1069
  %v1140 = vpack.c.b16 %v1074, %v1072
  %v1141 = vpack.c.b16 %v1075, %v1073
  %v1142 = vpack.c.b16 %v1078, %v1076
  %v1143 = vpack.c.b16 %v1079, %v1077
  %1208 = vmatprep.subr.bf16.mxu0 %v1081
  %1209 = vmatpush1.bf16.msra.mxu0 %v1080
  %1210 = vmatprep.subr.bf16.mxu0 %v1083
  %1211 = vmatpush1.bf16.msra.mxu0 %v1082
  %1212 = vmatprep.subr.bf16.mxu0 %v1085
  %1213 = vmatpush1.bf16.msra.mxu0 %v1084
  %1214 = vmatprep.subr.bf16.mxu0 %v1087
  %1215 = vmatpush1.bf16.msra.mxu0 %v1086
  %1216 = vmatprep.subr.bf16.mxu0 %v1089
  %1217 = vmatpush1.bf16.msra.mxu0 %v1088
  %1218 = vmatprep.subr.bf16.mxu0 %v1091
  %1219 = vmatpush1.bf16.msra.mxu0 %v1090
  %1220 = vmatprep.subr.bf16.mxu0 %v1093
  %1221 = vmatpush1.bf16.msra.mxu0 %v1092
  %1222 = vmatprep.subr.bf16.mxu0 %v1095
  %1223 = vmatpush1.bf16.msra.mxu0 %v1094
  %1224 = vmatprep.subr.bf16.mxu0 %v1097
  %1225 = vmatpush1.bf16.msra.mxu0 %v1096
  %1226 = vmatprep.subr.bf16.mxu0 %v1099
  %1227 = vmatpush1.bf16.msra.mxu0 %v1098
  %1228 = vmatprep.subr.bf16.mxu0 %v1101
  %1229 = vmatpush1.bf16.msra.mxu0 %v1100
  %1230 = vmatprep.subr.bf16.mxu0 %v1103
  %1231 = vmatpush1.bf16.msra.mxu0 %v1102
  %1232 = vmatprep.subr.bf16.mxu0 %v1105
  %1233 = vmatpush1.bf16.msra.mxu0 %v1104
  %1234 = vmatprep.subr.bf16.mxu0 %v1107
  %1235 = vmatpush1.bf16.msra.mxu0 %v1106
  %1236 = vmatprep.subr.bf16.mxu0 %v1109
  %1237 = vmatpush1.bf16.msra.mxu0 %v1108
  %1238 = vmatprep.subr.bf16.mxu0 %v1111
  %1239 = vmatpush1.bf16.msra.mxu0 %v1110
  %1240 = vmatprep.mubr.bf16.mxu0 %v749
  %1241 = vmatmul.mubr.bf16.gmra.mrb[0].mxu0 %v748
  %v1242 = vpop.f32.mrb[0].mxu0
  %v1243 = vadd.f32 %v881, %v1242
  %v1244 = vpop.f32.mrb[0].mxu0
  %v1245 = vadd.f32 %v885, %v1244
  %v1246 = vpop.f32.mrb[0].mxu0
  %v1247 = vadd.f32 %v881, %v1246
  %v1248 = vpop.f32.mrb[0].mxu0
  %v1249 = vadd.f32 %v885, %v1248
  %1250 = vmatprep.mubr.bf16.mxu0 %v753
  %1251 = vmatmul.mubr.bf16.gmra.mrb[0].mxu0 %v752
  %v1252 = vpop.f32.mrb[0].mxu0
  %v1253 = vadd.f32 %v881, %v1252
  %v1254 = vpop.f32.mrb[0].mxu0
  %v1255 = vadd.f32 %v885, %v1254
  %v1256 = vpop.f32.mrb[0].mxu0
  %v1257 = vadd.f32 %v881, %v1256
  %v1258 = vpop.f32.mrb[0].mxu0
  %v1259 = vadd.f32 %v885, %v1258
  %1260 = vmatprep.mubr.bf16.mxu0 %v757
  %1261 = vmatmul.mubr.bf16.gmra.mrb[0].mxu0 %v756
  %v1262 = vpop.f32.mrb[0].mxu0
  %v1263 = vadd.f32 %v881, %v1262
  %v1264 = vpop.f32.mrb[0].mxu0
  %v1265 = vadd.f32 %v885, %v1264
  %v1266 = vpop.f32.mrb[0].mxu0
  %v1267 = vadd.f32 %v881, %v1266
  %v1268 = vpop.f32.mrb[0].mxu0
  %v1269 = vadd.f32 %v885, %v1268
  %1270 = vmatprep.mubr.bf16.mxu0 %v761
  %1271 = vmatmul.mubr.bf16.gmra.mrb[0].mxu0 %v760
  %v1272 = vpop.f32.mrb[0].mxu0
  %v1273 = vadd.f32 %v881, %v1272
  %v1274 = vpop.f32.mrb[0].mxu0
  %v1275 = vadd.f32 %v885, %v1274
  %v1276 = vpop.f32.mrb[0].mxu0
  %v1277 = vadd.f32 %v881, %v1276
  %v1278 = vpop.f32.mrb[0].mxu0
  %v1279 = vadd.f32 %v885, %v1278
  %1280 = vmatprep.mubr.bf16.mxu0 %v765
  %1281 = vmatmul.mubr.bf16.gmra.mrb[0].mxu0 %v764
  %v1282 = vpop.f32.mrb[0].mxu0
  %v1283 = vadd.f32 %v881, %v1282
  %v1284 = vpop.f32.mrb[0].mxu0
  %v1285 = vadd.f32 %v885, %v1284
  %v1286 = vpop.f32.mrb[0].mxu0
  %v1287 = vadd.f32 %v881, %v1286
  %v1288 = vpop.f32.mrb[0].mxu0
  %v1289 = vadd.f32 %v885, %v1288
  %1290 = vmatprep.mubr.bf16.mxu0 %v769
  %1291 = vmatmul.mubr.bf16.gmra.mrb[0].mxu0 %v768
  %v1292 = vpop.f32.mrb[0].mxu0
  %v1293 = vadd.f32 %v881, %v1292
  %v1294 = vpop.f32.mrb[0].mxu0
  %v1295 = vadd.f32 %v885, %v1294
  %v1296 = vpop.f32.mrb[0].mxu0
  %v1297 = vadd.f32 %v881, %v1296
  %v1298 = vpop.f32.mrb[0].mxu0
  %v1299 = vadd.f32 %v885, %v1298
  %1300 = vmatprep.mubr.bf16.mxu0 %v773
  %1301 = vmatmul.mubr.bf16.gmra.mrb[0].mxu0 %v772
  %v1302 = vpop.f32.mrb[0].mxu0
  %v1303 = vadd.f32 %v881, %v1302
  %v1304 = vpop.f32.mrb[0].mxu0
  %v1305 = vadd.f32 %v885, %v1304
  %v1306 = vpop.f32.mrb[0].mxu0
  %v1307 = vadd.f32 %v881, %v1306
  %v1308 = vpop.f32.mrb[0].mxu0
  %v1309 = vadd.f32 %v885, %v1308
  %1310 = vmatprep.mubr.bf16.mxu0 %v777
  %1311 = vmatmul.mubr.bf16.gmra.mrb[0].mxu0 %v776
  %v1312 = vpop.f32.mrb[0].mxu0
  %v1313 = vadd.f32 %v881, %v1312
  %v1314 = vpop.f32.mrb[0].mxu0
  %v1315 = vadd.f32 %v885, %v1314
  %v1316 = vpop.f32.mrb[0].mxu0
  %v1317 = vadd.f32 %v881, %v1316
  %v1318 = vpop.f32.mrb[0].mxu0
  %v1319 = vadd.f32 %v885, %v1318
  %1320 = vmatprep.mubr.bf16.mxu0 %v781
  %1321 = vmatmul.mubr.bf16.gmra.mrb[0].mxu0 %v780
  %v1322 = vpop.f32.mrb[0].mxu0
  %v1323 = vadd.f32 %v881, %v1322
  %v1324 = vpop.f32.mrb[0].mxu0
  %v1325 = vadd.f32 %v885, %v1324
  %v1326 = vpop.f32.mrb[0].mxu0
  %v1327 = vadd.f32 %v881, %v1326
  %v1328 = vpop.f32.mrb[0].mxu0
  %v1329 = vadd.f32 %v885, %v1328
  %1330 = vmatprep.mubr.bf16.mxu0 %v785
  %1331 = vmatmul.mubr.bf16.gmra.mrb[0].mxu0 %v784
  %v1332 = vpop.f32.mrb[0].mxu0
  %v1333 = vadd.f32 %v881, %v1332
  %v1334 = vpop.f32.mrb[0].mxu0
  %v1335 = vadd.f32 %v885, %v1334
  %v1336 = vpop.f32.mrb[0].mxu0
  %v1337 = vadd.f32 %v881, %v1336
  %v1338 = vpop.f32.mrb[0].mxu0
  %v1339 = vadd.f32 %v885, %v1338
  %1340 = vmatprep.mubr.bf16.mxu0 %v789
  %1341 = vmatmul.mubr.bf16.gmra.mrb[0].mxu0 %v788
  %v1342 = vpop.f32.mrb[0].mxu0
  %v1343 = vadd.f32 %v881, %v1342
  %v1344 = vpop.f32.mrb[0].mxu0
  %v1345 = vadd.f32 %v885, %v1344
  %v1346 = vpop.f32.mrb[0].mxu0
  %v1347 = vadd.f32 %v881, %v1346
  %v1348 = vpop.f32.mrb[0].mxu0
  %v1349 = vadd.f32 %v885, %v1348
  %1350 = vmatprep.mubr.bf16.mxu0 %v793
  %1351 = vmatmul.mubr.bf16.gmra.mrb[0].mxu0 %v792
  %v1352 = vpop.f32.mrb[0].mxu0
  %v1353 = vadd.f32 %v881, %v1352
  %v1354 = vpop.f32.mrb[0].mxu0
  %v1355 = vadd.f32 %v885, %v1354
  %v1356 = vpop.f32.mrb[0].mxu0
  %v1357 = vadd.f32 %v881, %v1356
  %v1358 = vpop.f32.mrb[0].mxu0
  %v1359 = vadd.f32 %v885, %v1358
  %1360 = vmatprep.mubr.bf16.mxu0 %v797
  %1361 = vmatmul.mubr.bf16.gmra.mrb[0].mxu0 %v796
  %v1362 = vpop.f32.mrb[0].mxu0
  %v1363 = vadd.f32 %v881, %v1362
  %v1364 = vpop.f32.mrb[0].mxu0
  %v1365 = vadd.f32 %v885, %v1364
  %v1366 = vpop.f32.mrb[0].mxu0
  %v1367 = vadd.f32 %v881, %v1366
  %v1368 = vpop.f32.mrb[0].mxu0
  %v1369 = vadd.f32 %v885, %v1368
  %1370 = vmatprep.mubr.bf16.mxu0 %v801
  %1371 = vmatmul.mubr.bf16.gmra.mrb[0].mxu0 %v800
  %v1372 = vpop.f32.mrb[0].mxu0
  %v1373 = vadd.f32 %v881, %v1372
  %v1374 = vpop.f32.mrb[0].mxu0
  %v1375 = vadd.f32 %v885, %v1374
  %v1376 = vpop.f32.mrb[0].mxu0
  %v1377 = vadd.f32 %v881, %v1376
  %v1378 = vpop.f32.mrb[0].mxu0
  %v1379 = vadd.f32 %v885, %v1378
  %1380 = vmatprep.mubr.bf16.mxu0 %v805
  %1381 = vmatmul.mubr.bf16.gmra.mrb[0].mxu0 %v804
  %v1382 = vpop.f32.mrb[0].mxu0
  %v1383 = vadd.f32 %v881, %v1382
  %v1384 = vpop.f32.mrb[0].mxu0
  %v1385 = vadd.f32 %v885, %v1384
  %v1386 = vpop.f32.mrb[0].mxu0
  %v1387 = vadd.f32 %v881, %v1386
  %v1388 = vpop.f32.mrb[0].mxu0
  %v1389 = vadd.f32 %v885, %v1388
  %1390 = vmatprep.mubr.bf16.mxu0 %v809
  %1391 = vmatmul.mubr.bf16.gmra.mrb[0].mxu0 %v808
  %v1392 = vpop.f32.mrb[0].mxu0
  %v1393 = vadd.f32 %v881, %v1392
  %v1394 = vpop.f32.mrb[0].mxu0
  %v1395 = vadd.f32 %v885, %v1394
  %v1396 = vpop.f32.mrb[0].mxu0
  %v1397 = vadd.f32 %v881, %v1396
  %v1398 = vpop.f32.mrb[0].mxu0
  %v1399 = vadd.f32 %v885, %v1398
  %1400 = vdwg.mxu0
  %1401 = vmatprep.subr.bf16.mxu0 %v1113
  %1402 = vmatpush1.bf16.msra.mxu0 %v1112
  %1403 = vmatprep.subr.bf16.mxu0 %v1115
  %1404 = vmatpush1.bf16.msra.mxu0 %v1114
  %1405 = vmatprep.subr.bf16.mxu0 %v1117
  %1406 = vmatpush1.bf16.msra.mxu0 %v1116
  %1407 = vmatprep.subr.bf16.mxu0 %v1119
  %1408 = vmatpush1.bf16.msra.mxu0 %v1118
  %1409 = vmatprep.subr.bf16.mxu0 %v1121
  %1410 = vmatpush1.bf16.msra.mxu0 %v1120
  %1411 = vmatprep.subr.bf16.mxu0 %v1123
  %1412 = vmatpush1.bf16.msra.mxu0 %v1122
  %1413 = vmatprep.subr.bf16.mxu0 %v1125
  %1414 = vmatpush1.bf16.msra.mxu0 %v1124
  %1415 = vmatprep.subr.bf16.mxu0 %v1127
  %1416 = vmatpush1.bf16.msra.mxu0 %v1126
  %1417 = vmatprep.subr.bf16.mxu0 %v1129
  %1418 = vmatpush1.bf16.msra.mxu0 %v1128
  %1419 = vmatprep.subr.bf16.mxu0 %v1131
  %1420 = vmatpush1.bf16.msra.mxu0 %v1130
  %1421 = vmatprep.subr.bf16.mxu0 %v1133
  %1422 = vmatpush1.bf16.msra.mxu0 %v1132
  %1423 = vmatprep.subr.bf16.mxu0 %v1135
  %1424 = vmatpush1.bf16.msra.mxu0 %v1134
  %1425 = vmatprep.subr.bf16.mxu0 %v1137
  %1426 = vmatpush1.bf16.msra.mxu0 %v1136
  %1427 = vmatprep.subr.bf16.mxu0 %v1139
  %1428 = vmatpush1.bf16.msra.mxu0 %v1138
  %1429 = vmatprep.subr.bf16.mxu0 %v1141
  %1430 = vmatpush1.bf16.msra.mxu0 %v1140
  %1431 = vmatprep.subr.bf16.mxu0 %v1143
  %1432 = vmatpush1.bf16.msra.mxu0 %v1142
  %1433 = vmatprep.mubr.bf16.mxu0 %v751
  %1434 = vmatmul.mubr.bf16.gmra.mrb[0].mxu0 %v750
  %v1435 = vpop.f32.mrb[0].mxu0
  %v1436 = vadd.f32 %v1243, %v1435
  %v1437 = vpop.f32.mrb[0].mxu0
  %v1438 = vadd.f32 %v1245, %v1437
  %v1439 = vpop.f32.mrb[0].mxu0
  %v1440 = vadd.f32 %v1247, %v1439
  %v1441 = vpop.f32.mrb[0].mxu0
  %v1442 = vadd.f32 %v1249, %v1441
  %1443 = vmatprep.mubr.bf16.mxu0 %v755
  %1444 = vmatmul.mubr.bf16.gmra.mrb[0].mxu0 %v754
  %v1445 = vpop.f32.mrb[0].mxu0
  %v1446 = vadd.f32 %v1253, %v1445
  %v1447 = vpop.f32.mrb[0].mxu0
  %v1448 = vadd.f32 %v1255, %v1447
  %v1449 = vpop.f32.mrb[0].mxu0
  %v1450 = vadd.f32 %v1257, %v1449
  %v1451 = vpop.f32.mrb[0].mxu0
  %v1452 = vadd.f32 %v1259, %v1451
  %1453 = vmatprep.mubr.bf16.mxu0 %v759
  %1454 = vmatmul.mubr.bf16.gmra.mrb[0].mxu0 %v758
  %v1455 = vpop.f32.mrb[0].mxu0
  %v1456 = vadd.f32 %v1263, %v1455
  %v1457 = vpop.f32.mrb[0].mxu0
  %v1458 = vadd.f32 %v1265, %v1457
  %v1459 = vpop.f32.mrb[0].mxu0
  %v1460 = vadd.f32 %v1267, %v1459
  %v1461 = vpop.f32.mrb[0].mxu0
  %v1462 = vadd.f32 %v1269, %v1461
  %1463 = vmatprep.mubr.bf16.mxu0 %v763
  %1464 = vmatmul.mubr.bf16.gmra.mrb[0].mxu0 %v762
  %v1465 = vpop.f32.mrb[0].mxu0
  %v1466 = vadd.f32 %v1273, %v1465
  %v1467 = vpop.f32.mrb[0].mxu0
  %v1468 = vadd.f32 %v1275, %v1467
  %v1469 = vpop.f32.mrb[0].mxu0
  %v1470 = vadd.f32 %v1277, %v1469
  %v1471 = vpop.f32.mrb[0].mxu0
  %v1472 = vadd.f32 %v1279, %v1471
  %1473 = vmatprep.mubr.bf16.mxu0 %v767
  %1474 = vmatmul.mubr.bf16.gmra.mrb[0].mxu0 %v766
  %v1475 = vpop.f32.mrb[0].mxu0
  %v1476 = vadd.f32 %v1283, %v1475
  %v1477 = vpop.f32.mrb[0].mxu0
  %v1478 = vadd.f32 %v1285, %v1477
  %v1479 = vpop.f32.mrb[0].mxu0
  %v1480 = vadd.f32 %v1287, %v1479
  %v1481 = vpop.f32.mrb[0].mxu0
  %v1482 = vadd.f32 %v1289, %v1481
  %1483 = vmatprep.mubr.bf16.mxu0 %v771
  %1484 = vmatmul.mubr.bf16.gmra.mrb[0].mxu0 %v770
  %v1485 = vpop.f32.mrb[0].mxu0
  %v1486 = vadd.f32 %v1293, %v1485
  %v1487 = vpop.f32.mrb[0].mxu0
  %v1488 = vadd.f32 %v1295, %v1487
  %v1489 = vpop.f32.mrb[0].mxu0
  %v1490 = vadd.f32 %v1297, %v1489
  %v1491 = vpop.f32.mrb[0].mxu0
  %v1492 = vadd.f32 %v1299, %v1491
  %1493 = vmatprep.mubr.bf16.mxu0 %v775
  %1494 = vmatmul.mubr.bf16.gmra.mrb[0].mxu0 %v774
  %v1495 = vpop.f32.mrb[0].mxu0
  %v1496 = vadd.f32 %v1303, %v1495
  %v1497 = vpop.f32.mrb[0].mxu0
  %v1498 = vadd.f32 %v1305, %v1497
  %v1499 = vpop.f32.mrb[0].mxu0
  %v1500 = vadd.f32 %v1307, %v1499
  %v1501 = vpop.f32.mrb[0].mxu0
  %v1502 = vadd.f32 %v1309, %v1501
  %1503 = vmatprep.mubr.bf16.mxu0 %v779
  %1504 = vmatmul.mubr.bf16.gmra.mrb[0].mxu0 %v778
  %v1505 = vpop.f32.mrb[0].mxu0
  %v1506 = vadd.f32 %v1313, %v1505
  %v1507 = vpop.f32.mrb[0].mxu0
  %v1508 = vadd.f32 %v1315, %v1507
  %v1509 = vpop.f32.mrb[0].mxu0
  %v1510 = vadd.f32 %v1317, %v1509
  %v1511 = vpop.f32.mrb[0].mxu0
  %v1512 = vadd.f32 %v1319, %v1511
  %1513 = vmatprep.mubr.bf16.mxu0 %v783
  %1514 = vmatmul.mubr.bf16.gmra.mrb[0].mxu0 %v782
  %v1515 = vpop.f32.mrb[0].mxu0
  %v1516 = vadd.f32 %v1323, %v1515
  %v1517 = vpop.f32.mrb[0].mxu0
  %v1518 = vadd.f32 %v1325, %v1517
  %v1519 = vpop.f32.mrb[0].mxu0
  %v1520 = vadd.f32 %v1327, %v1519
  %v1521 = vpop.f32.mrb[0].mxu0
  %v1522 = vadd.f32 %v1329, %v1521
  %1523 = vmatprep.mubr.bf16.mxu0 %v787
  %1524 = vmatmul.mubr.bf16.gmra.mrb[0].mxu0 %v786
  %v1525 = vpop.f32.mrb[0].mxu0
  %v1526 = vadd.f32 %v1333, %v1525
  %v1527 = vpop.f32.mrb[0].mxu0
  %v1528 = vadd.f32 %v1335, %v1527
  %v1529 = vpop.f32.mrb[0].mxu0
  %v1530 = vadd.f32 %v1337, %v1529
  %v1531 = vpop.f32.mrb[0].mxu0
  %v1532 = vadd.f32 %v1339, %v1531
  %1533 = vmatprep.mubr.bf16.mxu0 %v791
  %1534 = vmatmul.mubr.bf16.gmra.mrb[0].mxu0 %v790
  %v1535 = vpop.f32.mrb[0].mxu0
  %v1536 = vadd.f32 %v1343, %v1535
  %v1537 = vpop.f32.mrb[0].mxu0
  %v1538 = vadd.f32 %v1345, %v1537
  %v1539 = vpop.f32.mrb[0].mxu0
  %v1540 = vadd.f32 %v1347, %v1539
  %v1541 = vpop.f32.mrb[0].mxu0
  %v1542 = vadd.f32 %v1349, %v1541
  %1543 = vmatprep.mubr.bf16.mxu0 %v795
  %1544 = vmatmul.mubr.bf16.gmra.mrb[0].mxu0 %v794
  %v1545 = vpop.f32.mrb[0].mxu0
  %v1546 = vadd.f32 %v1353, %v1545
  %v1547 = vpop.f32.mrb[0].mxu0
  %v1548 = vadd.f32 %v1355, %v1547
  %v1549 = vpop.f32.mrb[0].mxu0
  %v1550 = vadd.f32 %v1357, %v1549
  %v1551 = vpop.f32.mrb[0].mxu0
  %v1552 = vadd.f32 %v1359, %v1551
  %1553 = vmatprep.mubr.bf16.mxu0 %v799
  %1554 = vmatmul.mubr.bf16.gmra.mrb[0].mxu0 %v798
  %v1555 = vpop.f32.mrb[0].mxu0
  %v1556 = vadd.f32 %v1363, %v1555
  %v1557 = vpop.f32.mrb[0].mxu0
  %v1558 = vadd.f32 %v1365, %v1557
  %v1559 = vpop.f32.mrb[0].mxu0
  %v1560 = vadd.f32 %v1367, %v1559
  %v1561 = vpop.f32.mrb[0].mxu0
  %v1562 = vadd.f32 %v1369, %v1561
  %1563 = vmatprep.mubr.bf16.mxu0 %v803
  %1564 = vmatmul.mubr.bf16.gmra.mrb[0].mxu0 %v802
  %v1565 = vpop.f32.mrb[0].mxu0
  %v1566 = vadd.f32 %v1373, %v1565
  %v1567 = vpop.f32.mrb[0].mxu0
  %v1568 = vadd.f32 %v1375, %v1567
  %v1569 = vpop.f32.mrb[0].mxu0
  %v1570 = vadd.f32 %v1377, %v1569
  %v1571 = vpop.f32.mrb[0].mxu0
  %v1572 = vadd.f32 %v1379, %v1571
  %1573 = vmatprep.mubr.bf16.mxu0 %v807
  %1574 = vmatmul.mubr.bf16.gmra.mrb[0].mxu0 %v806
  %v1575 = vpop.f32.mrb[0].mxu0
  %v1576 = vadd.f32 %v1383, %v1575
  %v1577 = vpop.f32.mrb[0].mxu0
  %v1578 = vadd.f32 %v1385, %v1577
  %v1579 = vpop.f32.mrb[0].mxu0
  %v1580 = vadd.f32 %v1387, %v1579
  %v1581 = vpop.f32.mrb[0].mxu0
  %v1582 = vadd.f32 %v1389, %v1581
  %1583 = vmatprep.mubr.bf16.mxu0 %v811
  %1584 = vmatmul.mubr.bf16.gmra.mrb[0].mxu0 %v810
  %v1585 = vpop.f32.mrb[0].mxu0
  %v1586 = vadd.f32 %v1393, %v1585
  %v1587 = vpop.f32.mrb[0].mxu0
  %v1588 = vadd.f32 %v1395, %v1587
  %v1589 = vpop.f32.mrb[0].mxu0
  %v1590 = vadd.f32 %v1397, %v1589
  %v1591 = vpop.f32.mrb[0].mxu0
  %v1592 = vadd.f32 %v1399, %v1591
  %1593 = vdwg.mxu0
  %v1594 = vmax.f32 %v1436, 0.0
  %v1595 = vmax.f32 %v1438, 0.0
  %v1596 = vmax.f32 %v1440, 0.0
  %v1597 = vmax.f32 %v1442, 0.0
  %v1598 = vmax.f32 %v1446, 0.0
  %v1599 = vmax.f32 %v1448, 0.0
  %v1600 = vmax.f32 %v1450, 0.0
  %v1601 = vmax.f32 %v1452, 0.0
  %v1602 = vmax.f32 %v1456, 0.0
  %v1603 = vmax.f32 %v1458, 0.0
  %v1604 = vmax.f32 %v1460, 0.0
  %v1605 = vmax.f32 %v1462, 0.0
  %v1606 = vmax.f32 %v1466, 0.0
  %v1607 = vmax.f32 %v1468, 0.0
  %v1608 = vmax.f32 %v1470, 0.0
  %v1609 = vmax.f32 %v1472, 0.0
  %v1610 = vmax.f32 %v1476, 0.0
  %v1611 = vmax.f32 %v1478, 0.0
  %v1612 = vmax.f32 %v1480, 0.0
  %v1613 = vmax.f32 %v1482, 0.0
  %v1614 = vmax.f32 %v1486, 0.0
  %v1615 = vmax.f32 %v1488, 0.0
  %v1616 = vmax.f32 %v1490, 0.0
  %v1617 = vmax.f32 %v1492, 0.0
  %v1618 = vmax.f32 %v1496, 0.0
  %v1619 = vmax.f32 %v1498, 0.0
  %v1620 = vmax.f32 %v1500, 0.0
  %v1621 = vmax.f32 %v1502, 0.0
  %v1622 = vmax.f32 %v1506, 0.0
  %v1623 = vmax.f32 %v1508, 0.0
  %v1624 = vmax.f32 %v1510, 0.0
  %v1625 = vmax.f32 %v1512, 0.0
  %v1626 = vmax.f32 %v1516, 0.0
  %v1627 = vmax.f32 %v1518, 0.0
  %v1628 = vmax.f32 %v1520, 0.0
  %v1629 = vmax.f32 %v1522, 0.0
  %v1630 = vmax.f32 %v1526, 0.0
  %v1631 = vmax.f32 %v1528, 0.0
  %v1632 = vmax.f32 %v1530, 0.0
  %v1633 = vmax.f32 %v1532, 0.0
  %v1634 = vmax.f32 %v1536, 0.0
  %v1635 = vmax.f32 %v1538, 0.0
  %v1636 = vmax.f32 %v1540, 0.0
  %v1637 = vmax.f32 %v1542, 0.0
  %v1638 = vmax.f32 %v1546, 0.0
  %v1639 = vmax.f32 %v1548, 0.0
  %v1640 = vmax.f32 %v1550, 0.0
  %v1641 = vmax.f32 %v1552, 0.0
  %v1642 = vmax.f32 %v1556, 0.0
  %v1643 = vmax.f32 %v1558, 0.0
  %v1644 = vmax.f32 %v1560, 0.0
  %v1645 = vmax.f32 %v1562, 0.0
  %v1646 = vmax.f32 %v1566, 0.0
  %v1647 = vmax.f32 %v1568, 0.0
  %v1648 = vmax.f32 %v1570, 0.0
  %v1649 = vmax.f32 %v1572, 0.0
  %v1650 = vmax.f32 %v1576, 0.0
  %v1651 = vmax.f32 %v1578, 0.0
  %v1652 = vmax.f32 %v1580, 0.0
  %v1653 = vmax.f32 %v1582, 0.0
  %v1654 = vmax.f32 %v1586, 0.0
  %v1655 = vmax.f32 %v1588, 0.0
  %v1656 = vmax.f32 %v1590, 0.0
  %v1657 = vmax.f32 %v1592, 0.0
  %v1658 = vpack.c.bf16 %v1596, %v1594
  %v1659 = vpack.c.bf16 %v1597, %v1595
  %v1660 = vpack.c.bf16 %v1600, %v1598
  %v1661 = vpack.c.bf16 %v1601, %v1599
  %v1662 = vpack.c.bf16 %v1604, %v1602
  %v1663 = vpack.c.bf16 %v1605, %v1603
  %v1664 = vpack.c.bf16 %v1608, %v1606
  %v1665 = vpack.c.bf16 %v1609, %v1607
  %v1666 = vpack.c.bf16 %v1612, %v1610
  %v1667 = vpack.c.bf16 %v1613, %v1611
  %v1668 = vpack.c.bf16 %v1616, %v1614
  %v1669 = vpack.c.bf16 %v1617, %v1615
  %v1670 = vpack.c.bf16 %v1620, %v1618
  %v1671 = vpack.c.bf16 %v1621, %v1619
  %v1672 = vpack.c.bf16 %v1624, %v1622
  %v1673 = vpack.c.bf16 %v1625, %v1623
  %v1674 = vpack.c.bf16 %v1628, %v1626
  %v1675 = vpack.c.bf16 %v1629, %v1627
  %v1676 = vpack.c.bf16 %v1632, %v1630
  %v1677 = vpack.c.bf16 %v1633, %v1631
  %v1678 = vpack.c.bf16 %v1636, %v1634
  %v1679 = vpack.c.bf16 %v1637, %v1635
  %v1680 = vpack.c.bf16 %v1640, %v1638
  %v1681 = vpack.c.bf16 %v1641, %v1639
  %v1682 = vpack.c.bf16 %v1644, %v1642
  %v1683 = vpack.c.bf16 %v1645, %v1643
  %v1684 = vpack.c.bf16 %v1648, %v1646
  %v1685 = vpack.c.bf16 %v1649, %v1647
  %v1686 = vpack.c.bf16 %v1652, %v1650
  %v1687 = vpack.c.bf16 %v1653, %v1651
  %v1688 = vpack.c.bf16 %v1656, %v1654
  %v1689 = vpack.c.bf16 %v1657, %v1655
  %v1690 = vld [vmem:[%s5] sm:$0xf]
  %v1691 = vld [vmem:[%s5 + $0x4] sm:$0xf]
  %v1692 = vld [vmem:[%s5 + $0x8] sm:$0xf]
  %v1693 = vld [vmem:[%s5 + $0xc] sm:$0xf]
  %v1694 = vld [vmem:[%s5 + $0x10] sm:$0xf]
  %v1695 = vld [vmem:[%s5 + $0x14] sm:$0xf]
  %v1696 = vld [vmem:[%s5 + $0x18] sm:$0xf]
  %v1697 = vld [vmem:[%s5 + $0x1c] sm:$0xf]
  %v1698 = vld [vmem:[%s5 + $0x20] sm:$0xf]
  %v1699 = vld [vmem:[%s5 + $0x24] sm:$0xf]
  %v1700 = vld [vmem:[%s5 + $0x28] sm:$0xf]
  %v1701 = vld [vmem:[%s5 + $0x2c] sm:$0xf]
  %v1702 = vld [vmem:[%s5 + $0x30] sm:$0xf]
  %v1703 = vld [vmem:[%s5 + $0x34] sm:$0xf]
  %v1704 = vld [vmem:[%s5 + $0x38] sm:$0xf]
  %v1705 = vld [vmem:[%s5 + $0x3c] sm:$0xf]
  %v1706 = vld [vmem:[%s5 + $0x40] sm:$0xf]
  %v1707 = vld [vmem:[%s5 + $0x44] sm:$0xf]
  %v1708 = vld [vmem:[%s5 + $0x48] sm:$0xf]
  %v1709 = vld [vmem:[%s5 + $0x4c] sm:$0xf]
  %v1710 = vld [vmem:[%s5 + $0x50] sm:$0xf]
  %v1711 = vld [vmem:[%s5 + $0x54] sm:$0xf]
  %v1712 = vld [vmem:[%s5 + $0x58] sm:$0xf]
  %v1713 = vld [vmem:[%s5 + $0x5c] sm:$0xf]
  %v1714 = vld [vmem:[%s5 + $0x60] sm:$0xf]
  %v1715 = vld [vmem:[%s5 + $0x64] sm:$0xf]
  %v1716 = vld [vmem:[%s5 + $0x68] sm:$0xf]
  %v1717 = vld [vmem:[%s5 + $0x6c] sm:$0xf]
  %v1718 = vld [vmem:[%s5 + $0x70] sm:$0xf]
  %v1719 = vld [vmem:[%s5 + $0x74] sm:$0xf]
  %v1720 = vld [vmem:[%s5 + $0x78] sm:$0xf]
  %v1721 = vld [vmem:[%s5 + $0x7c] sm:$0xf]
  %v1722 = vld [vmem:[%s6] sm:$0x1]
  %v1724 = vlaneseq
  %v1725 = vshrl.u32 %v1724, 7
  %v1726 = vsub.s32 0, %v1725
  %v1727 = vrot.slane %v1722, %v1726
  %v1761 = vunpack.c.l.b16 %v1690
  %v1762 = vunpack.c.l.b16 %v1691
  %v1763 = vunpack.c.l.b16 %v1692
  %v1764 = vunpack.c.l.b16 %v1693
  %v1765 = vunpack.c.l.b16 %v1694
  %v1766 = vunpack.c.l.b16 %v1695
  %v1767 = vunpack.c.l.b16 %v1696
  %v1768 = vunpack.c.l.b16 %v1697
  %v1769 = vunpack.c.l.b16 %v1698
  %v1770 = vunpack.c.l.b16 %v1699
  %v1771 = vunpack.c.l.b16 %v1700
  %v1772 = vunpack.c.l.b16 %v1701
  %v1773 = vunpack.c.l.b16 %v1702
  %v1774 = vunpack.c.l.b16 %v1703
  %v1775 = vunpack.c.l.b16 %v1704
  %v1776 = vunpack.c.l.b16 %v1705
  %v1777 = vunpack.c.l.b16 %v1706
  %v1778 = vunpack.c.l.b16 %v1707
  %v1779 = vunpack.c.l.b16 %v1708
  %v1780 = vunpack.c.l.b16 %v1709
  %v1781 = vunpack.c.l.b16 %v1710
  %v1782 = vunpack.c.l.b16 %v1711
  %v1783 = vunpack.c.l.b16 %v1712
  %v1784 = vunpack.c.l.b16 %v1713
  %v1785 = vunpack.c.l.b16 %v1714
  %v1786 = vunpack.c.l.b16 %v1715
  %v1787 = vunpack.c.l.b16 %v1716
  %v1788 = vunpack.c.l.b16 %v1717
  %v1789 = vunpack.c.l.b16 %v1718
  %v1790 = vunpack.c.l.b16 %v1719
  %v1791 = vunpack.c.l.b16 %v1720
  %v1792 = vunpack.c.l.b16 %v1721
  %v1793 = vpack.c.b16 %v1762, %v1761
  %v1794 = vpack.c.b16 %v1764, %v1763
  %v1795 = vpack.c.b16 %v1766, %v1765
  %v1796 = vpack.c.b16 %v1768, %v1767
  %v1797 = vpack.c.b16 %v1770, %v1769
  %v1798 = vpack.c.b16 %v1772, %v1771
  %v1799 = vpack.c.b16 %v1774, %v1773
  %v1800 = vpack.c.b16 %v1776, %v1775
  %v1801 = vpack.c.b16 %v1778, %v1777
  %v1802 = vpack.c.b16 %v1780, %v1779
  %v1803 = vpack.c.b16 %v1782, %v1781
  %v1804 = vpack.c.b16 %v1784, %v1783
  %v1805 = vpack.c.b16 %v1786, %v1785
  %v1806 = vpack.c.b16 %v1788, %v1787
  %v1807 = vpack.c.b16 %v1790, %v1789
  %v1808 = vpack.c.b16 %v1792, %v1791
  %1825 = vmatprep.subr.bf16.mxu0 0
  %1826 = vmatpush1.bf16.msra.mxu0 %v1793
  %1827 = vmatprep.subr.bf16.mxu0 0
  %1828 = vmatpush1.bf16.msra.mxu0 %v1794
  %1829 = vmatprep.subr.bf16.mxu0 0
  %1830 = vmatpush1.bf16.msra.mxu0 %v1795
  %1831 = vmatprep.subr.bf16.mxu0 0
  %1832 = vmatpush1.bf16.msra.mxu0 %v1796
  %1833 = vmatprep.subr.bf16.mxu0 0
  %1834 = vmatpush1.bf16.msra.mxu0 %v1797
  %1835 = vmatprep.subr.bf16.mxu0 0
  %1836 = vmatpush1.bf16.msra.mxu0 %v1798
  %1837 = vmatprep.subr.bf16.mxu0 0
  %1838 = vmatpush1.bf16.msra.mxu0 %v1799
  %1839 = vmatprep.subr.bf16.mxu0 0
  %1840 = vmatpush1.bf16.msra.mxu0 %v1800
  %1841 = vmatprep.subr.bf16.mxu0 0
  %1842 = vmatpush1.bf16.msra.mxu0 %v1801
  %1843 = vmatprep.subr.bf16.mxu0 0
  %1844 = vmatpush1.bf16.msra.mxu0 %v1802
  %1845 = vmatprep.subr.bf16.mxu0 0
  %1846 = vmatpush1.bf16.msra.mxu0 %v1803
  %1847 = vmatprep.subr.bf16.mxu0 0
  %1848 = vmatpush1.bf16.msra.mxu0 %v1804
  %1849 = vmatprep.subr.bf16.mxu0 0
  %1850 = vmatpush1.bf16.msra.mxu0 %v1805
  %1851 = vmatprep.subr.bf16.mxu0 0
  %1852 = vmatpush1.bf16.msra.mxu0 %v1806
  %1853 = vmatprep.subr.bf16.mxu0 0
  %1854 = vmatpush1.bf16.msra.mxu0 %v1807
  %1855 = vmatprep.subr.bf16.mxu0 0
  %1856 = vmatpush1.bf16.msra.mxu0 %v1808
  %1857 = vmatprep.mubr.bf16.mxu0 %v1659
  %1858 = vmatmul.mubr.bf16.gmra.mrb[0].mxu0 %v1658
  %v1859 = vpop.f32.mrb[0].mxu0
  %v1860 = vadd.f32 %v1727, %v1859
  %v1861 = vpop.f32.mrb[0].mxu0
  %v1862 = vpop.f32.mrb[0].mxu0
  %v1863 = vadd.f32 %v1727, %v1862
  %v1864 = vpop.f32.mrb[0].mxu0
  %1865 = vmatprep.mubr.bf16.mxu0 %v1661
  %1866 = vmatmul.mubr.bf16.gmra.mrb[0].mxu0 %v1660
  %v1867 = vpop.f32.mrb[0].mxu0
  %v1868 = vadd.f32 %v1727, %v1867
  %v1869 = vpop.f32.mrb[0].mxu0
  %v1870 = vpop.f32.mrb[0].mxu0
  %v1871 = vadd.f32 %v1727, %v1870
  %v1872 = vpop.f32.mrb[0].mxu0
  %1873 = vmatprep.mubr.bf16.mxu0 %v1663
  %1874 = vmatmul.mubr.bf16.gmra.mrb[0].mxu0 %v1662
  %v1875 = vpop.f32.mrb[0].mxu0
  %v1876 = vadd.f32 %v1727, %v1875
  %v1877 = vpop.f32.mrb[0].mxu0
  %v1878 = vpop.f32.mrb[0].mxu0
  %v1879 = vadd.f32 %v1727, %v1878
  %v1880 = vpop.f32.mrb[0].mxu0
  %1881 = vmatprep.mubr.bf16.mxu0 %v1665
  %1882 = vmatmul.mubr.bf16.gmra.mrb[0].mxu0 %v1664
  %v1883 = vpop.f32.mrb[0].mxu0
  %v1884 = vadd.f32 %v1727, %v1883
  %v1885 = vpop.f32.mrb[0].mxu0
  %v1886 = vpop.f32.mrb[0].mxu0
  %v1887 = vadd.f32 %v1727, %v1886
  %v1888 = vpop.f32.mrb[0].mxu0
  %1889 = vmatprep.mubr.bf16.mxu0 %v1667
  %1890 = vmatmul.mubr.bf16.gmra.mrb[0].mxu0 %v1666
  %v1891 = vpop.f32.mrb[0].mxu0
  %v1892 = vadd.f32 %v1727, %v1891
  %v1893 = vpop.f32.mrb[0].mxu0
  %v1894 = vpop.f32.mrb[0].mxu0
  %v1895 = vadd.f32 %v1727, %v1894
  %v1896 = vpop.f32.mrb[0].mxu0
  %1897 = vmatprep.mubr.bf16.mxu0 %v1669
  %1898 = vmatmul.mubr.bf16.gmra.mrb[0].mxu0 %v1668
  %v1899 = vpop.f32.mrb[0].mxu0
  %v1900 = vadd.f32 %v1727, %v1899
  %v1901 = vpop.f32.mrb[0].mxu0
  %v1902 = vpop.f32.mrb[0].mxu0
  %v1903 = vadd.f32 %v1727, %v1902
  %v1904 = vpop.f32.mrb[0].mxu0
  %1905 = vmatprep.mubr.bf16.mxu0 %v1671
  %1906 = vmatmul.mubr.bf16.gmra.mrb[0].mxu0 %v1670
  %v1907 = vpop.f32.mrb[0].mxu0
  %v1908 = vadd.f32 %v1727, %v1907
  %v1909 = vpop.f32.mrb[0].mxu0
  %v1910 = vpop.f32.mrb[0].mxu0
  %v1911 = vadd.f32 %v1727, %v1910
  %v1912 = vpop.f32.mrb[0].mxu0
  %1913 = vmatprep.mubr.bf16.mxu0 %v1673
  %1914 = vmatmul.mubr.bf16.gmra.mrb[0].mxu0 %v1672
  %v1915 = vpop.f32.mrb[0].mxu0
  %v1916 = vadd.f32 %v1727, %v1915
  %v1917 = vpop.f32.mrb[0].mxu0
  %v1918 = vpop.f32.mrb[0].mxu0
  %v1919 = vadd.f32 %v1727, %v1918
  %v1920 = vpop.f32.mrb[0].mxu0
  %1921 = vmatprep.mubr.bf16.mxu0 %v1675
  %1922 = vmatmul.mubr.bf16.gmra.mrb[0].mxu0 %v1674
  %v1923 = vpop.f32.mrb[0].mxu0
  %v1924 = vadd.f32 %v1727, %v1923
  %v1925 = vpop.f32.mrb[0].mxu0
  %v1926 = vpop.f32.mrb[0].mxu0
  %v1927 = vadd.f32 %v1727, %v1926
  %v1928 = vpop.f32.mrb[0].mxu0
  %1929 = vmatprep.mubr.bf16.mxu0 %v1677
  %1930 = vmatmul.mubr.bf16.gmra.mrb[0].mxu0 %v1676
  %v1931 = vpop.f32.mrb[0].mxu0
  %v1932 = vadd.f32 %v1727, %v1931
  %v1933 = vpop.f32.mrb[0].mxu0
  %v1934 = vpop.f32.mrb[0].mxu0
  %v1935 = vadd.f32 %v1727, %v1934
  %v1936 = vpop.f32.mrb[0].mxu0
  %1937 = vmatprep.mubr.bf16.mxu0 %v1679
  %1938 = vmatmul.mubr.bf16.gmra.mrb[0].mxu0 %v1678
  %v1939 = vpop.f32.mrb[0].mxu0
  %v1940 = vadd.f32 %v1727, %v1939
  %v1941 = vpop.f32.mrb[0].mxu0
  %v1942 = vpop.f32.mrb[0].mxu0
  %v1943 = vadd.f32 %v1727, %v1942
  %v1944 = vpop.f32.mrb[0].mxu0
  %1945 = vmatprep.mubr.bf16.mxu0 %v1681
  %1946 = vmatmul.mubr.bf16.gmra.mrb[0].mxu0 %v1680
  %v1947 = vpop.f32.mrb[0].mxu0
  %v1948 = vadd.f32 %v1727, %v1947
  %v1949 = vpop.f32.mrb[0].mxu0
  %v1950 = vpop.f32.mrb[0].mxu0
  %v1951 = vadd.f32 %v1727, %v1950
  %v1952 = vpop.f32.mrb[0].mxu0
  %1953 = vmatprep.mubr.bf16.mxu0 %v1683
  %1954 = vmatmul.mubr.bf16.gmra.mrb[0].mxu0 %v1682
  %v1955 = vpop.f32.mrb[0].mxu0
  %v1956 = vadd.f32 %v1727, %v1955
  %v1957 = vpop.f32.mrb[0].mxu0
  %v1958 = vpop.f32.mrb[0].mxu0
  %v1959 = vadd.f32 %v1727, %v1958
  %v1960 = vpop.f32.mrb[0].mxu0
  %1961 = vmatprep.mubr.bf16.mxu0 %v1685
  %1962 = vmatmul.mubr.bf16.gmra.mrb[0].mxu0 %v1684
  %v1963 = vpop.f32.mrb[0].mxu0
  %v1964 = vadd.f32 %v1727, %v1963
  %v1965 = vpop.f32.mrb[0].mxu0
  %v1966 = vpop.f32.mrb[0].mxu0
  %v1967 = vadd.f32 %v1727, %v1966
  %v1968 = vpop.f32.mrb[0].mxu0
  %1969 = vmatprep.mubr.bf16.mxu0 %v1687
  %1970 = vmatmul.mubr.bf16.gmra.mrb[0].mxu0 %v1686
  %v1971 = vpop.f32.mrb[0].mxu0
  %v1972 = vadd.f32 %v1727, %v1971
  %v1973 = vpop.f32.mrb[0].mxu0
  %v1974 = vpop.f32.mrb[0].mxu0
  %v1975 = vadd.f32 %v1727, %v1974
  %v1976 = vpop.f32.mrb[0].mxu0
  %1977 = vmatprep.mubr.bf16.mxu0 %v1689
  %1978 = vmatmul.mubr.bf16.gmra.mrb[0].mxu0 %v1688
  %v1979 = vpop.f32.mrb[0].mxu0
  %v1980 = vadd.f32 %v1727, %v1979
  %v1981 = vpop.f32.mrb[0].mxu0
  %v1982 = vpop.f32.mrb[0].mxu0
  %v1983 = vadd.f32 %v1727, %v1982
  %v1984 = vpop.f32.mrb[0].mxu0
  %1985 = vdwg.mxu0
  %1986 = vxpose.xlu0.b32.start [1/16] %v1860, 128
  %1987 = vxpose.xlu0.b32.cont [2/16] %v1863, 128
  %1988 = vxpose.xlu0.b32.cont [3/16] %v1868, 128
  %1989 = vxpose.xlu0.b32.cont [4/16] %v1871, 128
  %1990 = vxpose.xlu0.b32.cont [5/16] %v1876, 128
  %1991 = vxpose.xlu0.b32.cont [6/16] %v1879, 128
  %1992 = vxpose.xlu0.b32.cont [7/16] %v1884, 128
  %1993 = vxpose.xlu0.b32.cont [8/16] %v1887, 128
  %1994 = vxpose.xlu0.b32.cont [9/16] %v1892, 128
  %1995 = vxpose.xlu0.b32.cont [10/16] %v1895, 128
  %1996 = vxpose.xlu0.b32.cont [11/16] %v1900, 128
  %1997 = vxpose.xlu0.b32.cont [12/16] %v1903, 128
  %1998 = vxpose.xlu0.b32.cont [13/16] %v1908, 128
  %1999 = vxpose.xlu0.b32.cont [14/16] %v1911, 128
  %2000 = vxpose.xlu0.b32.cont [15/16] %v1916, 128
  %2001 = vxpose.xlu0.b32.end [16/16] %v1919, 128
  %v2002 = vpop.trf.xlu0
  %v2003 = vpop.trf.xlu0
  %v2004 = vpop.trf.xlu0
  %v2005 = vpop.trf.xlu0
  %v2006 = vpop.trf.xlu0
  %v2007 = vpop.trf.xlu0
  %v2008 = vpop.trf.xlu0
  %v2009 = vpop.trf.xlu0
  %v2010 = vpop.trf.xlu0
  %v2011 = vpop.trf.xlu0
  %v2012 = vpop.trf.xlu0
  %v2013 = vpop.trf.xlu0
  %v2014 = vpop.trf.xlu0
  %v2015 = vpop.trf.xlu0
  %v2016 = vpop.trf.xlu0
  %v2017 = vpop.trf.xlu0
  %2018 = vxpose.xlu0.b32.start [1/16] %v1924, 128
  %2019 = vxpose.xlu0.b32.cont [2/16] %v1927, 128
  %2020 = vxpose.xlu0.b32.cont [3/16] %v1932, 128
  %2021 = vxpose.xlu0.b32.cont [4/16] %v1935, 128
  %2022 = vxpose.xlu0.b32.cont [5/16] %v1940, 128
  %2023 = vxpose.xlu0.b32.cont [6/16] %v1943, 128
  %2024 = vxpose.xlu0.b32.cont [7/16] %v1948, 128
  %2025 = vxpose.xlu0.b32.cont [8/16] %v1951, 128
  %2026 = vxpose.xlu0.b32.cont [9/16] %v1956, 128
  %2027 = vxpose.xlu0.b32.cont [10/16] %v1959, 128
  %2028 = vxpose.xlu0.b32.cont [11/16] %v1964, 128
  %2029 = vxpose.xlu0.b32.cont [12/16] %v1967, 128
  %2030 = vxpose.xlu0.b32.cont [13/16] %v1972, 128
  %2031 = vxpose.xlu0.b32.cont [14/16] %v1975, 128
  %2032 = vxpose.xlu0.b32.cont [15/16] %v1980, 128
  %2033 = vxpose.xlu0.b32.end [16/16] %v1983, 128
  %v2034 = vpop.trf.xlu0
  %v2035 = vpop.trf.xlu0
  %v2036 = vpop.trf.xlu0
  %v2037 = vpop.trf.xlu0
  %v2038 = vpop.trf.xlu0
  %v2039 = vpop.trf.xlu0
  %v2040 = vpop.trf.xlu0
  %v2041 = vpop.trf.xlu0
  %v2042 = vpop.trf.xlu0
  %v2043 = vpop.trf.xlu0
  %v2044 = vpop.trf.xlu0
  %v2045 = vpop.trf.xlu0
  %v2046 = vpop.trf.xlu0
  %v2047 = vpop.trf.xlu0
  %v2048 = vpop.trf.xlu0
  %v2049 = vpop.trf.xlu0
  %v2050 = vmul.f32 %v2002, %v2034
  %v2051 = vmul.f32 %v2003, %v2035
  %v2052 = vmul.f32 %v2004, %v2036
  %v2053 = vmul.f32 %v2005, %v2037
  %v2054 = vmul.f32 %v2006, %v2038
  %v2055 = vmul.f32 %v2007, %v2039
  %v2056 = vmul.f32 %v2008, %v2040
  %v2057 = vmul.f32 %v2009, %v2041
  %v2058 = vmul.f32 %v2010, %v2042
  %v2059 = vmul.f32 %v2011, %v2043
  %v2060 = vmul.f32 %v2012, %v2044
  %v2061 = vmul.f32 %v2013, %v2045
  %v2062 = vmul.f32 %v2014, %v2046
  %v2063 = vmul.f32 %v2015, %v2047
  %v2064 = vmul.f32 %v2016, %v2048
  %v2065 = vmul.f32 %v2017, %v2049
  %v2066 = vadd.f32 %v2050, %v2051
  %v2067 = vadd.f32 %v2066, %v2052
  %v2068 = vadd.f32 %v2067, %v2053
  %v2069 = vadd.f32 %v2068, %v2054
  %v2070 = vadd.f32 %v2069, %v2055
  %v2071 = vadd.f32 %v2070, %v2056
  %v2072 = vadd.f32 %v2071, %v2057
  %v2073 = vadd.f32 %v2072, %v2058
  %v2074 = vadd.f32 %v2073, %v2059
  %v2075 = vadd.f32 %v2074, %v2060
  %v2076 = vadd.f32 %v2075, %v2061
  %v2077 = vadd.f32 %v2076, %v2062
  %v2078 = vadd.f32 %v2077, %v2063
  %v2079 = vadd.f32 %v2078, %v2064
  %v2080 = vadd.f32 %v2079, %v2065
  %v2081 = vrot.slane %v2080, 4
  %v2082 = vadd.f32 %v2080, %v2081
  %v2083 = vrot.slane %v2082, 2
  %v2084 = vadd.f32 %v2082, %v2083
  %v2085 = vrot.slane %v2084, 1
  %v2086 = vadd.f32 %v2084, %v2085
  %v2087 = vmul.f32 %v2002, %v2002
  %v2088 = vmul.f32 %v2003, %v2003
  %v2089 = vmul.f32 %v2004, %v2004
  %v2090 = vmul.f32 %v2005, %v2005
  %v2091 = vmul.f32 %v2006, %v2006
  %v2092 = vmul.f32 %v2007, %v2007
  %v2093 = vmul.f32 %v2008, %v2008
  %v2094 = vmul.f32 %v2009, %v2009
  %v2095 = vmul.f32 %v2010, %v2010
  %v2096 = vmul.f32 %v2011, %v2011
  %v2097 = vmul.f32 %v2012, %v2012
  %v2098 = vmul.f32 %v2013, %v2013
  %v2099 = vmul.f32 %v2014, %v2014
  %v2100 = vmul.f32 %v2015, %v2015
  %v2101 = vmul.f32 %v2016, %v2016
  %v2102 = vmul.f32 %v2017, %v2017
  %v2103 = vadd.f32 %v2087, %v2088
  %v2104 = vadd.f32 %v2103, %v2089
  %v2105 = vadd.f32 %v2104, %v2090
  %v2106 = vadd.f32 %v2105, %v2091
  %v2107 = vadd.f32 %v2106, %v2092
  %v2108 = vadd.f32 %v2107, %v2093
  %v2109 = vadd.f32 %v2108, %v2094
  %v2110 = vadd.f32 %v2109, %v2095
  %v2111 = vadd.f32 %v2110, %v2096
  %v2112 = vadd.f32 %v2111, %v2097
  %v2113 = vadd.f32 %v2112, %v2098
  %v2114 = vadd.f32 %v2113, %v2099
  %v2115 = vadd.f32 %v2114, %v2100
  %v2116 = vadd.f32 %v2115, %v2101
  %v2117 = vadd.f32 %v2116, %v2102
  %v2118 = vrot.slane %v2117, 4
  %v2119 = vadd.f32 %v2117, %v2118
  %v2120 = vrot.slane %v2119, 2
  %v2121 = vadd.f32 %v2119, %v2120
  %v2122 = vrot.slane %v2121, 1
  %v2123 = vadd.f32 %v2121, %v2122
  %v2124 = vmul.f32 %v2034, %v2034
  %v2125 = vmul.f32 %v2035, %v2035
  %v2126 = vmul.f32 %v2036, %v2036
  %v2127 = vmul.f32 %v2037, %v2037
  %v2128 = vmul.f32 %v2038, %v2038
  %v2129 = vmul.f32 %v2039, %v2039
  %v2130 = vmul.f32 %v2040, %v2040
  %v2131 = vmul.f32 %v2041, %v2041
  %v2132 = vmul.f32 %v2042, %v2042
  %v2133 = vmul.f32 %v2043, %v2043
  %v2134 = vmul.f32 %v2044, %v2044
  %v2135 = vmul.f32 %v2045, %v2045
  %v2136 = vmul.f32 %v2046, %v2046
  %v2137 = vmul.f32 %v2047, %v2047
  %v2138 = vmul.f32 %v2048, %v2048
  %v2139 = vmul.f32 %v2049, %v2049
  %v2140 = vadd.f32 %v2124, %v2125
  %v2141 = vadd.f32 %v2140, %v2126
  %v2142 = vadd.f32 %v2141, %v2127
  %v2143 = vadd.f32 %v2142, %v2128
  %v2144 = vadd.f32 %v2143, %v2129
  %v2145 = vadd.f32 %v2144, %v2130
  %v2146 = vadd.f32 %v2145, %v2131
  %v2147 = vadd.f32 %v2146, %v2132
  %v2148 = vadd.f32 %v2147, %v2133
  %v2149 = vadd.f32 %v2148, %v2134
  %v2150 = vadd.f32 %v2149, %v2135
  %v2151 = vadd.f32 %v2150, %v2136
  %v2152 = vadd.f32 %v2151, %v2137
  %v2153 = vadd.f32 %v2152, %v2138
  %v2154 = vadd.f32 %v2153, %v2139
  %v2155 = vrot.slane %v2154, 4
  %v2156 = vadd.f32 %v2154, %v2155
  %v2157 = vrot.slane %v2156, 2
  %v2158 = vadd.f32 %v2156, %v2157
  %v2159 = vrot.slane %v2158, 1
  %v2160 = vadd.f32 %v2158, %v2159
  %v2161 = vmul.f32 %v2123, %v2160
  %v2162 = vrsqrt.pop %v2161
  %v2163 = vmin.f32 %v2162, 1e+08
  %v2164 = vmul.f32 %v2086, %v2163
  %v2165 = vadd.f32 %v2164, 1.0
  %v2166 = vmul.f32 %v2165, 0.5
  %2167 = vst [vmem:[%s7] sm:$0x1] %v2166
  // Predicated region
  $region30: #{associationp_forward.1} parent=0 // pred_check
    _
  $region31: #{associationp_forward.1} parent=0 // pred_check_branch
    %2169 = sbr.rel (0) target = $region33
  $region32: #{associationp_forward.1} parent=0 // pred_region
    _
  $region33: #{associationp_forward.1} parent=0 // pred_fallthru
    _
  // Predicated region
  $region34: #{associationp_forward.1} parent=0 // pred_check
    _
  $region35: #{associationp_forward.1} parent=0 // pred_check_branch
    %2171 = sbr.rel (0) target = $region37
  $region36: #{associationp_forward.1} parent=0 // pred_region
    _
  $region37: #{associationp_forward.1} parent=0 // pred_fallthru
    _

</llo_original>
